<compile_context>
chip_gen: v7x
topology: tpu7x:2x2x1
jax: 0.10.0
libtpu: 0.0.40
codegen_flags: <defaults>
</compile_context>

<pallas_src>
import functools

import jax
import jax.numpy as jnp
import numpy as np
from jax import lax
from jax.experimental import pallas as pl
from jax.experimental.pallas import tpu as pltpu


def _round_up(x, m):
    return (x + m - 1) // m * m


def _conv_in_lrelu_kernel(x_ref, w_ref, p_ref, m_ref, o_ref, *,
                          k, wp, stride, n_valid, eps, negative_slope):
    """One batch sample per grid step.

    x_ref: (1, Cin, Lp)      bf16  reflection-padded input, spatial flattened
    w_ref: (k*k, Cout, Cin)  bf16  conv taps
    p_ref: (Cout, 3)         f32   columns = (bias, gamma, beta)
    m_ref: (1, L)            f32   1.0 on valid output columns, 0.0 on junk
    o_ref: (1, Cout, L)      f32   conv + InstanceNorm + LeakyReLU (flat spatial)
    """
    cout = o_ref.shape[1]
    l_out = o_ref.shape[2]

    # Conv as k*k shifted matmuls: for flat output index q (virtual row width
    # wp), tap (ki, kj) reads the input at flat index stride*q + ki*wp + kj.
    acc = jnp.zeros((cout, l_out), jnp.float32)
    for ki in range(k):
        for kj in range(k):
            shift = ki * wp + kj
            if stride == 1:
                x_sl = x_ref[0, :, shift:shift + l_out]                  # (Cin, L)
            else:
                x_sl = x_ref[0, :, pl.ds(shift, l_out, stride=stride)]   # (Cin, L)
            w_tap = w_ref[ki * k + kj]                                   # (Cout, Cin)
            acc = acc + jnp.dot(w_tap, x_sl,
                                preferred_element_type=jnp.float32)

    bias = p_ref[:, 0:1]      # (Cout, 1)
    gamma = p_ref[:, 1:2]
    beta = p_ref[:, 2:3]
    mask = m_ref[...]         # (1, L)

    y = acc + bias

    # InstanceNorm2d: biased variance, stats over the valid spatial positions.
    inv_n = 1.0 / n_valid
    mean = jnp.sum(y * mask, axis=1, keepdims=True) * inv_n              # (Cout, 1)
    centered = y - mean
    var = jnp.sum(centered * centered * mask, axis=1, keepdims=True) * inv_n
    z = centered * lax.rsqrt(var + eps) * gamma + beta

    # LeakyReLU(0.2)
    o_ref[0] = jnp.where(z >= 0, z, negative_slope * z)


def conv_layer_forward(x, weight, bias, gamma, beta, *, kernel_size, stride,
                       eps=1e-5, negative_slope=0.2):
    """x: (N, Cin, H, W); weight: (Cout, Cin, k, k); bias/gamma/beta: (Cout,)."""
    n, cin, h, w = x.shape
    cout = weight.shape[0]
    k = kernel_size
    pad = k // 2

    # ReflectionPad2d (single cheap pass in plain JAX; boundary gather has no
    # clean BlockSpec expression).
    x_pad = jnp.pad(x, ((0, 0), (0, 0), (pad, pad), (pad, pad)), mode="reflect")
    hp, wp = h + 2 * pad, w + 2 * pad
    h_out = (hp - k) // stride + 1
    w_out = (wp - k) // stride + 1
    p_valid = h_out * w_out

    # Flattened-spatial layout for the flat-shift conv decomposition.
    l_out = _round_up(h_out * wp, 128)                 # lane-dense output length
    max_shift = (k - 1) * wp + (k - 1)
    lp_pad = max(_round_up(max_shift + stride * l_out, 128), hp * wp)

    x_flat = x_pad.reshape(n, cin, hp * wp)
    x_flat = jnp.pad(x_flat, ((0, 0), (0, 0), (0, lp_pad - hp * wp)))
    x_flat = x_flat.astype(jnp.bfloat16)

    # (Cout, Cin, k, k) -> (k*k, Cout, Cin), bf16 for the MXU.
    w_taps = jnp.transpose(weight, (2, 3, 0, 1)).reshape(k * k, cout, cin)
    w_taps = w_taps.astype(jnp.bfloat16)

    # bias / gamma / beta in a single small block.
    params = jnp.stack([bias, gamma, beta], axis=1).astype(jnp.float32)

    # Valid-column mask: flat index q is valid iff q//wp < h_out and q%wp < w_out.
    q = np.arange(l_out)
    mask_np = ((q % wp < w_out) & (q // wp < h_out)).astype(np.float32)
    mask = jnp.asarray(mask_np[None, :])

    kernel = functools.partial(
        _conv_in_lrelu_kernel, k=k, wp=wp, stride=stride,
        n_valid=float(p_valid), eps=eps, negative_slope=negative_slope)

    flops = 2 * n * p_valid * cin * k * k * cout
    bytes_accessed = int(x_flat.size * 2 + w_taps.size * 2 + params.size * 4
                         + mask.size * 4 + n * cout * l_out * 4)
    cost = pl.CostEstimate(flops=flops, transcendentals=n * cout,
                           bytes_accessed=bytes_accessed)

    out_flat = pl.pallas_call(
        kernel,
        out_shape=jax.ShapeDtypeStruct((n, cout, l_out), jnp.float32),
        grid_spec=pltpu.PrefetchScalarGridSpec(
            num_scalar_prefetch=0,
            grid=(n,),
            in_specs=[
                pl.BlockSpec((1, cin, lp_pad), lambda i: (i, 0, 0)),     # x
                pl.BlockSpec((k * k, cout, cin), lambda i: (0, 0, 0)),   # weights
                pl.BlockSpec((cout, 3), lambda i: (0, 0)),               # bias/gamma/beta
                pl.BlockSpec((1, l_out), lambda i: (0, 0)),              # valid mask
            ],
            out_specs=pl.BlockSpec((1, cout, l_out), lambda i: (i, 0, 0)),
        ),
        compiler_params=pltpu.CompilerParams(
            dimension_semantics=("parallel",),
            vmem_limit_bytes=32 * 1024 * 1024),
        cost_estimate=cost,
    )(x_flat, w_taps, params, mask)

    # (N, Cout, L) f32 is already channel-major: just drop the per-row padding
    # columns.  No NHWC->NCHW transpose pass.
    out = out_flat[:, :, :h_out * wp].reshape(n, cout, h_out, wp)
    return out[:, :, :, :w_out]


def _reference_forward(x, weight, bias, gamma, beta, *, kernel_size, stride,
                       eps=1e-5, negative_slope=0.2):
    pad = kernel_size // 2
    x_pad = jnp.pad(x, ((0, 0), (0, 0), (pad, pad), (pad, pad)), mode="reflect")
    y = lax.conv_general_dilated(
        x_pad, weight, window_strides=(stride, stride), padding="VALID",
        dimension_numbers=("NCHW", "OIHW", "NCHW"))
    y = y + bias[None, :, None, None]
    mean = jnp.mean(y, axis=(2, 3), keepdims=True)
    var = jnp.mean((y - mean) ** 2, axis=(2, 3), keepdims=True)
    z = (y - mean) * lax.rsqrt(var + eps)
    z = z * gamma[None, :, None, None] + beta[None, :, None, None]
    return jnp.where(z >= 0, z, negative_slope * z)


if __name__ == "__main__":
    # Small shapes consistent with the module: ConvLayer(4, 8, kernel_size=3, stride=1)
    N, CIN, H, W = 2, 4, 16, 16
    COUT, K, STRIDE = 8, 3, 1

    key = jax.random.PRNGKey(0)
    kx, kw, kb, kg, kbe = jax.random.split(key, 5)

    x = jax.random.normal(kx, (N, CIN, H, W), dtype=jnp.float32)
    weight = jax.random.normal(kw, (COUT, CIN, K, K), dtype=jnp.float32) * 0.1
    bias = jax.random.normal(kb, (COUT,), dtype=jnp.float32) * 0.1
    # InstanceNorm affine params (PyTorch init is gamma=1, beta=0; perturb for a
    # nontrivial test).
    gamma = 1.0 + 0.1 * jax.random.normal(kg, (COUT,), dtype=jnp.float32)
    beta = 0.1 * jax.random.normal(kbe, (COUT,), dtype=jnp.float32)

    fwd = jax.jit(functools.partial(conv_layer_forward,
                                    kernel_size=K, stride=STRIDE))
    out = fwd(x, weight, bias, gamma, beta)
    out = jax.block_until_ready(out)

    ref = _reference_forward(x, weight, bias, gamma, beta,
                             kernel_size=K, stride=STRIDE)
    # bf16 matmul inputs -> tolerance loosened vs the pure-f32 version.
    np.testing.assert_allclose(np.asarray(out), np.asarray(ref),
                               rtol=5e-2, atol=5e-2)
    print("KERNEL_OK")
</pallas_src>

<mosaic_0001>
module attributes {stable_mosaic.version = 11 : i64} {
  func.func @_conv_in_lrelu_kernel(%arg0: i32, %arg1: memref<1x4x512xbf16, #tpu.memory_space<vmem>>, %arg2: memref<9x8x4xbf16, #tpu.memory_space<vmem>>, %arg3: memref<8x3xf32, #tpu.memory_space<vmem>>, %arg4: memref<1x384xf32, #tpu.memory_space<vmem>>, %arg5: memref<1x8x384xf32, #tpu.memory_space<vmem>>) attributes {dimension_semantics = [#tpu.dimension_semantics<parallel>], iteration_bounds = array<i64: 2>, scalar_prefetch = 0 : i64, scratch_operands = 0 : i64, tpu.core_type = #tpu.core_type<tc>, window_params = [{transform_indices = @transform_0, window_bounds = array<i64: 1, 4, 512>}, {pipeline_mode = #tpu.pipeline_mode<synchronous>, transform_indices = @transform_1, window_bounds = array<i64: 9, 8, 4>}, {pipeline_mode = #tpu.pipeline_mode<synchronous>, transform_indices = @transform_2, window_bounds = array<i64: 8, 3>}, {pipeline_mode = #tpu.pipeline_mode<synchronous>, transform_indices = @transform_3, window_bounds = array<i64: 1, 384>}, {transform_indices = @transform_4, window_bounds = array<i64: 1, 8, 384>}]} {
    %cst = arith.constant 0.000000e+00 : f32
    %0 = vector.broadcast %cst : f32 to vector<8x384xf32>
    %c0 = arith.constant 0 : index
    %c0_0 = arith.constant 0 : index
    %c0_1 = arith.constant 0 : index
    %1 = vector.load %arg1[%c0, %c0_0, %c0_1] : memref<1x4x512xbf16, #tpu.memory_space<vmem>>, vector<1x4x384xbf16>
    %2 = vector.shape_cast %1 : vector<1x4x384xbf16> to vector<4x384xbf16>
    %c0_2 = arith.constant 0 : index
    %c0_3 = arith.constant 0 : index
    %c0_4 = arith.constant 0 : index
    %3 = vector.load %arg2[%c0_2, %c0_3, %c0_4] : memref<9x8x4xbf16, #tpu.memory_space<vmem>>, vector<1x8x4xbf16>
    %4 = vector.shape_cast %3 : vector<1x8x4xbf16> to vector<8x4xbf16>
    %cst_5 = arith.constant dense<0.000000e+00> : vector<8x384xf32>
    %5 = tpu.matmul %4, %2, %cst_5 {dimension_numbers = #tpu.dot_dimension_numbers<[1], [0], [0], [1], [0, 0, 1, 1], [], []>} : vector<8x4xbf16>, vector<4x384xbf16>, vector<8x384xf32> -> vector<8x384xf32>
    %6 = arith.addf %0, %5 : vector<8x384xf32>
    %c0_6 = arith.constant 0 : index
    %c0_7 = arith.constant 0 : index
    %c1 = arith.constant 1 : index
    %7 = vector.load %arg1[%c0_6, %c0_7, %c1] : memref<1x4x512xbf16, #tpu.memory_space<vmem>>, vector<1x4x384xbf16>
    %8 = vector.shape_cast %7 : vector<1x4x384xbf16> to vector<4x384xbf16>
    %c1_8 = arith.constant 1 : index
    %c0_9 = arith.constant 0 : index
    %c0_10 = arith.constant 0 : index
    %9 = vector.load %arg2[%c1_8, %c0_9, %c0_10] : memref<9x8x4xbf16, #tpu.memory_space<vmem>>, vector<1x8x4xbf16>
    %10 = vector.shape_cast %9 : vector<1x8x4xbf16> to vector<8x4xbf16>
    %cst_11 = arith.constant dense<0.000000e+00> : vector<8x384xf32>
    %11 = tpu.matmul %10, %8, %cst_11 {dimension_numbers = #tpu.dot_dimension_numbers<[1], [0], [0], [1], [0, 0, 1, 1], [], []>} : vector<8x4xbf16>, vector<4x384xbf16>, vector<8x384xf32> -> vector<8x384xf32>
    %12 = arith.addf %6, %11 : vector<8x384xf32>
    %c0_12 = arith.constant 0 : index
    %c0_13 = arith.constant 0 : index
    %c2 = arith.constant 2 : index
    %13 = vector.load %arg1[%c0_12, %c0_13, %c2] : memref<1x4x512xbf16, #tpu.memory_space<vmem>>, vector<1x4x384xbf16>
    %14 = vector.shape_cast %13 : vector<1x4x384xbf16> to vector<4x384xbf16>
    %c2_14 = arith.constant 2 : index
    %c0_15 = arith.constant 0 : index
    %c0_16 = arith.constant 0 : index
    %15 = vector.load %arg2[%c2_14, %c0_15, %c0_16] : memref<9x8x4xbf16, #tpu.memory_space<vmem>>, vector<1x8x4xbf16>
    %16 = vector.shape_cast %15 : vector<1x8x4xbf16> to vector<8x4xbf16>
    %cst_17 = arith.constant dense<0.000000e+00> : vector<8x384xf32>
    %17 = tpu.matmul %16, %14, %cst_17 {dimension_numbers = #tpu.dot_dimension_numbers<[1], [0], [0], [1], [0, 0, 1, 1], [], []>} : vector<8x4xbf16>, vector<4x384xbf16>, vector<8x384xf32> -> vector<8x384xf32>
    %18 = arith.addf %12, %17 : vector<8x384xf32>
    %c0_18 = arith.constant 0 : index
    %c0_19 = arith.constant 0 : index
    %c18 = arith.constant 18 : index
    %19 = vector.load %arg1[%c0_18, %c0_19, %c18] : memref<1x4x512xbf16, #tpu.memory_space<vmem>>, vector<1x4x384xbf16>
    %20 = vector.shape_cast %19 : vector<1x4x384xbf16> to vector<4x384xbf16>
    %c3 = arith.constant 3 : index
    %c0_20 = arith.constant 0 : index
    %c0_21 = arith.constant 0 : index
    %21 = vector.load %arg2[%c3, %c0_20, %c0_21] : memref<9x8x4xbf16, #tpu.memory_space<vmem>>, vector<1x8x4xbf16>
    %22 = vector.shape_cast %21 : vector<1x8x4xbf16> to vector<8x4xbf16>
    %cst_22 = arith.constant dense<0.000000e+00> : vector<8x384xf32>
    %23 = tpu.matmul %22, %20, %cst_22 {dimension_numbers = #tpu.dot_dimension_numbers<[1], [0], [0], [1], [0, 0, 1, 1], [], []>} : vector<8x4xbf16>, vector<4x384xbf16>, vector<8x384xf32> -> vector<8x384xf32>
    %24 = arith.addf %18, %23 : vector<8x384xf32>
    %c0_23 = arith.constant 0 : index
    %c0_24 = arith.constant 0 : index
    %c19 = arith.constant 19 : index
    %25 = vector.load %arg1[%c0_23, %c0_24, %c19] : memref<1x4x512xbf16, #tpu.memory_space<vmem>>, vector<1x4x384xbf16>
    %26 = vector.shape_cast %25 : vector<1x4x384xbf16> to vector<4x384xbf16>
    %c4 = arith.constant 4 : index
    %c0_25 = arith.constant 0 : index
    %c0_26 = arith.constant 0 : index
    %27 = vector.load %arg2[%c4, %c0_25, %c0_26] : memref<9x8x4xbf16, #tpu.memory_space<vmem>>, vector<1x8x4xbf16>
    %28 = vector.shape_cast %27 : vector<1x8x4xbf16> to vector<8x4xbf16>
    %cst_27 = arith.constant dense<0.000000e+00> : vector<8x384xf32>
    %29 = tpu.matmul %28, %26, %cst_27 {dimension_numbers = #tpu.dot_dimension_numbers<[1], [0], [0], [1], [0, 0, 1, 1], [], []>} : vector<8x4xbf16>, vector<4x384xbf16>, vector<8x384xf32> -> vector<8x384xf32>
    %30 = arith.addf %24, %29 : vector<8x384xf32>
    %c0_28 = arith.constant 0 : index
    %c0_29 = arith.constant 0 : index
    %c20 = arith.constant 20 : index
    %31 = vector.load %arg1[%c0_28, %c0_29, %c20] : memref<1x4x512xbf16, #tpu.memory_space<vmem>>, vector<1x4x384xbf16>
    %32 = vector.shape_cast %31 : vector<1x4x384xbf16> to vector<4x384xbf16>
    %c5 = arith.constant 5 : index
    %c0_30 = arith.constant 0 : index
    %c0_31 = arith.constant 0 : index
    %33 = vector.load %arg2[%c5, %c0_30, %c0_31] : memref<9x8x4xbf16, #tpu.memory_space<vmem>>, vector<1x8x4xbf16>
    %34 = vector.shape_cast %33 : vector<1x8x4xbf16> to vector<8x4xbf16>
    %cst_32 = arith.constant dense<0.000000e+00> : vector<8x384xf32>
    %35 = tpu.matmul %34, %32, %cst_32 {dimension_numbers = #tpu.dot_dimension_numbers<[1], [0], [0], [1], [0, 0, 1, 1], [], []>} : vector<8x4xbf16>, vector<4x384xbf16>, vector<8x384xf32> -> vector<8x384xf32>
    %36 = arith.addf %30, %35 : vector<8x384xf32>
    %c0_33 = arith.constant 0 : index
    %c0_34 = arith.constant 0 : index
    %c36 = arith.constant 36 : index
    %37 = vector.load %arg1[%c0_33, %c0_34, %c36] : memref<1x4x512xbf16, #tpu.memory_space<vmem>>, vector<1x4x384xbf16>
    %38 = vector.shape_cast %37 : vector<1x4x384xbf16> to vector<4x384xbf16>
    %c6 = arith.constant 6 : index
    %c0_35 = arith.constant 0 : index
    %c0_36 = arith.constant 0 : index
    %39 = vector.load %arg2[%c6, %c0_35, %c0_36] : memref<9x8x4xbf16, #tpu.memory_space<vmem>>, vector<1x8x4xbf16>
    %40 = vector.shape_cast %39 : vector<1x8x4xbf16> to vector<8x4xbf16>
    %cst_37 = arith.constant dense<0.000000e+00> : vector<8x384xf32>
    %41 = tpu.matmul %40, %38, %cst_37 {dimension_numbers = #tpu.dot_dimension_numbers<[1], [0], [0], [1], [0, 0, 1, 1], [], []>} : vector<8x4xbf16>, vector<4x384xbf16>, vector<8x384xf32> -> vector<8x384xf32>
    %42 = arith.addf %36, %41 : vector<8x384xf32>
    %c0_38 = arith.constant 0 : index
    %c0_39 = arith.constant 0 : index
    %c37 = arith.constant 37 : index
    %43 = vector.load %arg1[%c0_38, %c0_39, %c37] : memref<1x4x512xbf16, #tpu.memory_space<vmem>>, vector<1x4x384xbf16>
    %44 = vector.shape_cast %43 : vector<1x4x384xbf16> to vector<4x384xbf16>
    %c7 = arith.constant 7 : index
    %c0_40 = arith.constant 0 : index
    %c0_41 = arith.constant 0 : index
    %45 = vector.load %arg2[%c7, %c0_40, %c0_41] : memref<9x8x4xbf16, #tpu.memory_space<vmem>>, vector<1x8x4xbf16>
    %46 = vector.shape_cast %45 : vector<1x8x4xbf16> to vector<8x4xbf16>
    %cst_42 = arith.constant dense<0.000000e+00> : vector<8x384xf32>
    %47 = tpu.matmul %46, %44, %cst_42 {dimension_numbers = #tpu.dot_dimension_numbers<[1], [0], [0], [1], [0, 0, 1, 1], [], []>} : vector<8x4xbf16>, vector<4x384xbf16>, vector<8x384xf32> -> vector<8x384xf32>
    %48 = arith.addf %42, %47 : vector<8x384xf32>
    %c0_43 = arith.constant 0 : index
    %c0_44 = arith.constant 0 : index
    %c38 = arith.constant 38 : index
    %49 = vector.load %arg1[%c0_43, %c0_44, %c38] : memref<1x4x512xbf16, #tpu.memory_space<vmem>>, vector<1x4x384xbf16>
    %50 = vector.shape_cast %49 : vector<1x4x384xbf16> to vector<4x384xbf16>
    %c8 = arith.constant 8 : index
    %c0_45 = arith.constant 0 : index
    %c0_46 = arith.constant 0 : index
    %51 = vector.load %arg2[%c8, %c0_45, %c0_46] : memref<9x8x4xbf16, #tpu.memory_space<vmem>>, vector<1x8x4xbf16>
    %52 = vector.shape_cast %51 : vector<1x8x4xbf16> to vector<8x4xbf16>
    %cst_47 = arith.constant dense<0.000000e+00> : vector<8x384xf32>
    %53 = tpu.matmul %52, %50, %cst_47 {dimension_numbers = #tpu.dot_dimension_numbers<[1], [0], [0], [1], [0, 0, 1, 1], [], []>} : vector<8x4xbf16>, vector<4x384xbf16>, vector<8x384xf32> -> vector<8x384xf32>
    %54 = arith.addf %48, %53 : vector<8x384xf32>
    %c0_48 = arith.constant 0 : index
    %c0_49 = arith.constant 0 : index
    %55 = vector.load %arg3[%c0_48, %c0_49] : memref<8x3xf32, #tpu.memory_space<vmem>>, vector<8x1xf32>
    %c0_50 = arith.constant 0 : index
    %c1_51 = arith.constant 1 : index
    %56 = vector.load %arg3[%c0_50, %c1_51] : memref<8x3xf32, #tpu.memory_space<vmem>>, vector<8x1xf32>
    %c0_52 = arith.constant 0 : index
    %c2_53 = arith.constant 2 : index
    %57 = vector.load %arg3[%c0_52, %c2_53] : memref<8x3xf32, #tpu.memory_space<vmem>>, vector<8x1xf32>
    %c0_54 = arith.constant 0 : index
    %c0_55 = arith.constant 0 : index
    %58 = vector.load %arg4[%c0_54, %c0_55] : memref<1x384xf32, #tpu.memory_space<vmem>>, vector<1x384xf32>
    %59 = vector.broadcast %55 : vector<8x1xf32> to vector<8x384xf32>
    %60 = arith.addf %54, %59 : vector<8x384xf32>
    %61 = vector.broadcast %58 : vector<1x384xf32> to vector<8x384xf32>
    %62 = arith.mulf %60, %61 : vector<8x384xf32>
    %cst_56 = arith.constant dense<0.000000e+00> : vector<8xf32>
    %63 = vector.multi_reduction <add>, %62, %cst_56 [1] : vector<8x384xf32> to vector<8xf32>
    %64 = vector.shape_cast %63 : vector<8xf32> to vector<8x1xf32>
    %cst_57 = arith.constant 3.906250e-03 : f32
    %65 = vector.broadcast %cst_57 : f32 to vector<8x1xf32>
    %66 = arith.mulf %64, %65 : vector<8x1xf32>
    %67 = vector.broadcast %66 : vector<8x1xf32> to vector<8x384xf32>
    %68 = arith.subf %60, %67 : vector<8x384xf32>
    %69 = arith.mulf %68, %68 : vector<8x384xf32>
    %70 = vector.broadcast %58 : vector<1x384xf32> to vector<8x384xf32>
    %71 = arith.mulf %69, %70 : vector<8x384xf32>
    %cst_58 = arith.constant dense<0.000000e+00> : vector<8xf32>
    %72 = vector.multi_reduction <add>, %71, %cst_58 [1] : vector<8x384xf32> to vector<8xf32>
    %73 = vector.shape_cast %72 : vector<8xf32> to vector<8x1xf32>
    %cst_59 = arith.constant 3.906250e-03 : f32
    %74 = vector.broadcast %cst_59 : f32 to vector<8x1xf32>
    %75 = arith.mulf %73, %74 : vector<8x1xf32>
    %cst_60 = arith.constant 9.99999974E-6 : f32
    %76 = vector.broadcast %cst_60 : f32 to vector<8x1xf32>
    %77 = arith.addf %75, %76 : vector<8x1xf32>
    %78 = math.rsqrt %77 : vector<8x1xf32>
    %79 = vector.broadcast %78 : vector<8x1xf32> to vector<8x384xf32>
    %80 = arith.mulf %68, %79 : vector<8x384xf32>
    %81 = vector.broadcast %56 : vector<8x1xf32> to vector<8x384xf32>
    %82 = arith.mulf %80, %81 : vector<8x384xf32>
    %83 = vector.broadcast %57 : vector<8x1xf32> to vector<8x384xf32>
    %84 = arith.addf %82, %83 : vector<8x384xf32>
    %cst_61 = arith.constant 0.000000e+00 : f32
    %85 = vector.broadcast %cst_61 : f32 to vector<8x384xf32>
    %86 = arith.cmpf oge, %84, %85 : vector<8x384xf32>
    %cst_62 = arith.constant 2.000000e-01 : f32
    %87 = vector.broadcast %cst_62 : f32 to vector<8x384xf32>
    %88 = arith.mulf %87, %84 : vector<8x384xf32>
    %89 = arith.select %86, %84, %88 : vector<8x384xi1>, vector<8x384xf32>
    %c0_63 = arith.constant 0 : index
    %c0_64 = arith.constant 0 : index
    %c0_65 = arith.constant 0 : index
    %90 = vector.load %arg5[%c0_63, %c0_64, %c0_65] : memref<1x8x384xf32, #tpu.memory_space<vmem>>, vector<1x8x384xf32>
    %91 = vector.shape_cast %90 : vector<1x8x384xf32> to vector<8x384xf32>
    %92 = vector.shape_cast %89 : vector<8x384xf32> to vector<1x8x384xf32>
    tpu.vector_store %arg5[%c0_63, %c0_64, %c0_65], %92 {strides = array<i32>} : memref<1x8x384xf32, #tpu.memory_space<vmem>>, vector<1x8x384xf32>,
    return
  }
  func.func @transform_0(%arg0: i32) -> (i32, i32, i32) {
    %c0_i32 = arith.constant 0 : i32
    %c0_i32_0 = arith.constant 0 : i32
    %c0_i32_1 = arith.constant 0 : i32
    return %arg0, %c0_i32, %c0_i32_0 : i32, i32, i32
  }
  func.func @transform_1(%arg0: i32) -> (i32, i32, i32) {
    %c0_i32 = arith.constant 0 : i32
    %c0_i32_0 = arith.constant 0 : i32
    %c0_i32_1 = arith.constant 0 : i32
    %c0_i32_2 = arith.constant 0 : i32
    return %c0_i32, %c0_i32_0, %c0_i32_1 : i32, i32, i32
  }
  func.func @transform_2(%arg0: i32) -> (i32, i32) {
    %c0_i32 = arith.constant 0 : i32
    %c0_i32_0 = arith.constant 0 : i32
    %c0_i32_1 = arith.constant 0 : i32
    return %c0_i32, %c0_i32_0 : i32, i32
  }
  func.func @transform_3(%arg0: i32) -> (i32, i32) {
    %c0_i32 = arith.constant 0 : i32
    %c0_i32_0 = arith.constant 0 : i32
    %c0_i32_1 = arith.constant 0 : i32
    return %c0_i32, %c0_i32_0 : i32, i32
  }
  func.func @transform_4(%arg0: i32) -> (i32, i32, i32) {
    %c0_i32 = arith.constant 0 : i32
    %c0_i32_0 = arith.constant 0 : i32
    %c0_i32_1 = arith.constant 0 : i32
    return %arg0, %c0_i32, %c0_i32_0 : i32, i32, i32
  }
}

</mosaic_0001>

<llo_original>
// kernel: conv_layer_forward.1
$region0: #{conv_layer_forward.1}
  #allocation0 [shape = 'u32[]', space=smem, size = 0x4, offset = 0x4, fixed_abs, tag = 'smem constant byte address 0x4 - core index']
  #allocation1 [shape = 'u32[144,128]{1,0:T(1,128)}', space=vmem, size = 0x12000, scoped, tag = 'internal scratch']
  %s0 = inlined_call_operand.vmem [shape: bf16[2,4,512], index: 0, kind: input, shape index: {}]
  %s1 = inlined_call_operand.vmem [shape: bf16[9,8,4], index: 1, kind: input, shape index: {}]
  %s2 = inlined_call_operand.vmem [shape: f32[8,3], index: 2, kind: input, shape index: {}]
  %s3 = inlined_call_operand.vmem [shape: f32[1,384], index: 3, kind: input, shape index: {}]
  %s4 = inlined_call_operand.vmem [shape: f32[2,8,384], index: 4, kind: output, shape index: {}]
  %s5 = sld [smem:[#allocation0]]
  $region49: #{conv_layer_forward.1} parent=0
    _
  %s7 = ssub.s32 1, %s5
  %s8 = scalar_select 0, %s7, %s5
  loop: start=0, step=1, limit=4
  $region2: #{conv_layer_forward.1} parent=0 // loop_pre_header
    _
  $region3: #{conv_layer_forward.1} parent=0 // loop_header
    %s10 = sphi 0, %s14
    %p11 = scmp.ge.s32.totalorder %s10, 4
    %s20 = sphi 0, %s22
    %s23 = sphi 0, %s20
    %s24 = sphi 0, %s23
    %s40 = sphi 0, %s24
    %s44 = sphi 0, %s44
    %s46 = sphi 0, %s44
    %s47 = sphi 0, %s46
    %s61 = sphi 0, %s47
    %s65 = sphi 0, %s65
    %s67 = sphi 0, %s65
    %s68 = sphi 0, %s67
    %s82 = sphi 0, %s68
    %s86 = sphi 0, %s86
    %s88 = sphi 0, %s86
    %s89 = sphi 0, %s88
    %s103 = sphi 0, %s89
    %s109 = sphi 0, %s111
    %s112 = sphi 0, %s109
    %s113 = sphi 0, %s112
    %s129 = sphi 0, %s113
  $region4: #{conv_layer_forward.1} parent=0 // loop_header_branch
    %13 = sbr.rel (%p11) target = $region8
  $region5: #{conv_layer_forward.1} parent=0 // loop_body
    %s15 = ssub.s32 %s10, 1
    %s16 = ssub.s32 %s10, 2
    %s17 = sadd.s32 %s10, 1
    %s18 = ssub.s32 %s10, %s17
    %p19 = scmp.eq.s32.totalorder %s18, 0
    %s21 = sadd.s32 %s20, 1
    %s22 = scalar_select %p19, %s20, %s21
    %p25 = pneg %p19
    %p26 = scmp.eq.s32.totalorder %s10, 1
    %p27 = por %p25, %p26
    %p28 = scmp.ne.s32.totalorder %s20, %s23
    %p29 = scmp.eq.s32.totalorder %s10, 0
    %p30 = por %p28, %p29
    %p31 = scmp.ne.s32.totalorder %s20, %s23
    %p32 = scmp.eq.s32.totalorder %s15, 1
    %p33 = por %p31, %p32
    %p34 = scmp.ne.s32.totalorder %s23, %s24
    %p35 = scmp.eq.s32.totalorder %s15, 0
    %p36 = por %p34, %p35
    %p37 = scmp.ne.s32.totalorder %s23, %s24
    %p38 = scmp.eq.s32.totalorder %s16, 1
    %p39 = por %p37, %p38
    %p41 = scmp.ne.s32.totalorder %s24, %s40
    %p42 = scmp.eq.s32.totalorder %s16, 0
    %p43 = por %p41, %p42
    %s45 = sadd.s32 %s44, 1
    %p48 = scmp.eq.s32.totalorder %s10, 1
    %p49 = scmp.ne.s32.totalorder %s44, %s46
    %p50 = scmp.eq.s32.totalorder %s10, 0
    %p51 = por %p49, %p50
    %p52 = scmp.ne.s32.totalorder %s44, %s46
    %p53 = scmp.eq.s32.totalorder %s15, 1
    %p54 = por %p52, %p53
    %p55 = scmp.ne.s32.totalorder %s46, %s47
    %p56 = scmp.eq.s32.totalorder %s15, 0
    %p57 = por %p55, %p56
    %p58 = scmp.ne.s32.totalorder %s46, %s47
    %p59 = scmp.eq.s32.totalorder %s16, 1
    %p60 = por %p58, %p59
    %p62 = scmp.ne.s32.totalorder %s47, %s61
    %p63 = scmp.eq.s32.totalorder %s16, 0
    %p64 = por %p62, %p63
    %s66 = sadd.s32 %s65, 1
    %p69 = scmp.eq.s32.totalorder %s10, 1
    %p70 = scmp.ne.s32.totalorder %s65, %s67
    %p71 = scmp.eq.s32.totalorder %s10, 0
    %p72 = por %p70, %p71
    %p73 = scmp.ne.s32.totalorder %s65, %s67
    %p74 = scmp.eq.s32.totalorder %s15, 1
    %p75 = por %p73, %p74
    %p76 = scmp.ne.s32.totalorder %s67, %s68
    %p77 = scmp.eq.s32.totalorder %s15, 0
    %p78 = por %p76, %p77
    %p79 = scmp.ne.s32.totalorder %s67, %s68
    %p80 = scmp.eq.s32.totalorder %s16, 1
    %p81 = por %p79, %p80
    %p83 = scmp.ne.s32.totalorder %s68, %s82
    %p84 = scmp.eq.s32.totalorder %s16, 0
    %p85 = por %p83, %p84
    %s87 = sadd.s32 %s86, 1
    %p90 = scmp.eq.s32.totalorder %s10, 1
    %p91 = scmp.ne.s32.totalorder %s86, %s88
    %p92 = scmp.eq.s32.totalorder %s10, 0
    %p93 = por %p91, %p92
    %p94 = scmp.ne.s32.totalorder %s86, %s88
    %p95 = scmp.eq.s32.totalorder %s15, 1
    %p96 = por %p94, %p95
    %p97 = scmp.ne.s32.totalorder %s88, %s89
    %p98 = scmp.eq.s32.totalorder %s15, 0
    %p99 = por %p97, %p98
    %p100 = scmp.ne.s32.totalorder %s88, %s89
    %p101 = scmp.eq.s32.totalorder %s16, 1
    %p102 = por %p100, %p101
    %p104 = scmp.ne.s32.totalorder %s89, %s103
    %p105 = scmp.eq.s32.totalorder %s16, 0
    %p106 = por %p104, %p105
    %s107 = ssub.s32 %s10, %s17
    %p108 = scmp.eq.s32.totalorder %s107, 0
    %s110 = sadd.s32 %s109, 1
    %s111 = scalar_select %p108, %s109, %s110
    %p114 = pneg %p108
    %p115 = scmp.eq.s32.totalorder %s10, 1
    %p116 = por %p114, %p115
    %p117 = scmp.ne.s32.totalorder %s109, %s112
    %p118 = scmp.eq.s32.totalorder %s10, 0
    %p119 = por %p117, %p118
    %p120 = scmp.ne.s32.totalorder %s109, %s112
    %p121 = scmp.eq.s32.totalorder %s15, 1
    %p122 = por %p120, %p121
    %p123 = scmp.ne.s32.totalorder %s112, %s113
    %p124 = scmp.eq.s32.totalorder %s15, 0
    %p125 = por %p123, %p124
    %p126 = scmp.ne.s32.totalorder %s112, %s113
    %p127 = scmp.eq.s32.totalorder %s16, 1
    %p128 = por %p126, %p127
    %p130 = scmp.ne.s32.totalorder %s113, %s129
    %p131 = scmp.eq.s32.totalorder %s16, 0
    %p132 = por %p130, %p131
    %p133 = scmp.le.s32.totalorder 1, %s10
    %p134 = scmp.lt.s32.totalorder %s10, 3
    %p135 = pnand %p133, %p134
    %p136 = pneg %p135
    // Predicated region
    $region9: #{conv_layer_forward.1} parent=5 // pred_check
      _
    $region10: #{conv_layer_forward.1} parent=5 // pred_check_branch
      %138 = sbr.rel (%p135) target = $region12
    $region11: #{conv_layer_forward.1} parent=5 // pred_region
      %s139 = ssub.s32 %s10, 1
      // Predicated region
      $region13: #{conv_layer_forward.1} parent=11 // pred_check
        %p140 = pneg %p57
      $region14: #{conv_layer_forward.1} parent=11 // pred_check_branch
        %142 = sbr.rel (%p140) target = $region16
      $region15: #{conv_layer_forward.1} parent=11 // pred_region
        _
      $region16: #{conv_layer_forward.1} parent=11 // pred_fallthru
        _
      // Predicated region
      $region17: #{conv_layer_forward.1} parent=11 // pred_check
        %p143 = pneg %p78
      $region18: #{conv_layer_forward.1} parent=11 // pred_check_branch
        %145 = sbr.rel (%p143) target = $region20
      $region19: #{conv_layer_forward.1} parent=11 // pred_region
        _
      $region20: #{conv_layer_forward.1} parent=11 // pred_fallthru
        _
      // Predicated region
      $region21: #{conv_layer_forward.1} parent=11 // pred_check
        %p146 = pneg %p99
      $region22: #{conv_layer_forward.1} parent=11 // pred_check_branch
        %148 = sbr.rel (%p146) target = $region24
      $region23: #{conv_layer_forward.1} parent=11 // pred_region
        _
      $region24: #{conv_layer_forward.1} parent=11 // pred_fallthru
        _
    $region12: #{conv_layer_forward.1} parent=5 // pred_fallthru
      _
    %p149 = scmp.lt.s32.totalorder %s10, 2
    // Predicated region
    $region25: #{conv_layer_forward.1} parent=5 // pred_check
      %p150 = pneg %p149
    $region26: #{conv_layer_forward.1} parent=5 // pred_check_branch
      %152 = sbr.rel (%p150) target = $region28
    $region27: #{conv_layer_forward.1} parent=5 // pred_region
      // Predicated region
      $region29: #{conv_layer_forward.1} parent=27 // pred_check
        %p153 = pneg %p30
      $region30: #{conv_layer_forward.1} parent=27 // pred_check_branch
        %155 = sbr.rel (%p153) target = $region32
      $region31: #{conv_layer_forward.1} parent=27 // pred_region
        %p156 = scmp.lt.s32.totalorder %s10, 1
        %s157 = scalar_select %p156, %s10, 1
        %s158 = smul.addr %s157, 4
        %s159 = smul.addr %s158, 2
        %s160 = scalar_lea.vmem %s0, %s159
      $region32: #{conv_layer_forward.1} parent=27 // pred_fallthru
        _
    $region28: #{conv_layer_forward.1} parent=5 // pred_fallthru
      _
    %p161 = scmp.le.s32.totalorder 1, %s10
    %p162 = scmp.lt.s32.totalorder %s10, 3
    %p163 = pnand %p161, %p162
    %p164 = pneg %p163
    // Predicated region
    $region33: #{conv_layer_forward.1} parent=5 // pred_check
      _
    $region34: #{conv_layer_forward.1} parent=5 // pred_check_branch
      %166 = sbr.rel (%p163) target = $region36
    $region35: #{conv_layer_forward.1} parent=5 // pred_region
      %s167 = ssub.s32 %s10, 1
      %p168 = scmp.lt.s32.totalorder %s15, 1
      %s169 = scalar_select %p168, %s15, 1
      %s170 = smul.addr %s169, 4
      %s171 = smul.addr %s170, 2
      %s172 = scalar_lea.vmem %s0, %s171
      %p173 = pneg %p36
      %p174 = pneg %p33
      %p175 = pneg %p57
      %p176 = pneg %p54
      %p177 = pneg %p78
      %p178 = pneg %p75
      %p179 = pneg %p99
      %p180 = pneg %p96
      %p181 = pneg %p125
      %p182 = pneg %p122
      %p183 = scmp.lt.s32.totalorder %s15, 1
      %s184 = scalar_select %p183, %s15, 1
      %s185 = smul.addr %s184, 3
      %s186 = smul.addr %s185, 8
      %s187 = scalar_lea.vmem %s4, %s186
      %p188 = scmp.lt.s32.totalorder %s15, 1
      %s189 = scalar_select %p188, %s15, 1
      %s190 = smul.addr %s189, 4
      %s191 = smul.addr %s190, 2
      %s192 = scalar_lea.vmem %s0, %s191
      %p193 = scmp.lt.s32.totalorder %s15, 1
      %s194 = scalar_select %p193, %s15, 1
      %s195 = smul.addr %s194, 3
      %s196 = smul.addr %s195, 8
      %s197 = scalar_lea.vmem %s4, %s196
      %v199 = vld [vmem:[%s192] sm:$0x3f]
      %v200 = vld [vmem:[%s1] sm:$0xf]
      %v201 = vld [vmem:[%s192] sm:$0xff]
      %s202 = scalar_lea.vmem %s1, 4
      %v203 = vld [vmem:[%s202] sm:$0xf]
      %v205 = vcombine.high %v201, %v201
      %v207 = vunpack.c.l.s4 1983009808
      %v208 = vunpack.c.0.s8 %v207
      %v209 = vlaneseq
      %v210 = vshrl.u32 %v209, 7
      %v211 = vsub.s32 %v208, %v210
      %v212 = vrot.slane %v201, %v211
      %v214 = vunpack.c.l.s4 1983009808
      %v215 = vunpack.c.0.s8 %v214
      %v216 = vlaneseq
      %v217 = vshrl.u32 %v216, 7
      %v218 = vsub.s32 %v215, %v217
      %v219 = vrot.slane %v205, %v218
      %v220 = vcombine.high %v212, %v212
      %v221 = vcombine.high %v219, %v219
      %222 = vrot.lane.b32.xlu0 %v212, 127
      %v223 = vpop.permute.xlu0 %222
      %224 = vrot.lane.b32.xlu0 %v220, 127
      %v225 = vpop.permute.xlu0 %224
      %226 = vrot.lane.b32.xlu0 %v219, 127
      %v227 = vpop.permute.xlu0 %226
      %228 = vrot.lane.b32.xlu0 %v221, 127
      %v229 = vpop.permute.xlu0 %228
      %vm230 = vcmask 1039360
      %v231 = vsel %vm230, %v223, %v225
      %v232 = vsel %vm230, %v225, %v227
      %v233 = vsel %vm230, %v227, %v229
      %vm234 = vcmask 31744
      %v236 = vsel %vm234, %v203, 0
      %vm238 = vcmask 1041408
      %v240 = vsel %vm238, %v231, 0
      %v243 = vsel %vm238, %v232, 0
      %v246 = vsel %vm238, %v233, 0
      %248 = vmatprep.subr.bf16.mxu0 %v243
      %249 = vmatpush1.bf16.msra.mxu0 %v240
      %250 = vmatprep.subr.bf16.mxu0 0
      %251 = vmatpush1.bf16.msra.mxu0 0
      %252 = vmatprep.subr.bf16.mxu0 0
      %253 = vmatpush1.bf16.msra.mxu0 0
      %254 = vmatprep.subr.bf16.mxu0 0
      %255 = vmatpush1.bf16.msra.mxu0 0
      %256 = vmatprep.subr.bf16.mxu0 0
      %257 = vmatpush1.bf16.msra.mxu0 0
      %258 = vmatprep.subr.bf16.mxu0 0
      %259 = vmatpush1.bf16.msra.mxu0 0
      %260 = vmatprep.subr.bf16.mxu0 0
      %261 = vmatpush1.bf16.msra.mxu0 0
      %262 = vmatprep.subr.bf16.mxu0 0
      %263 = vmatpush1.bf16.msra.mxu0 0
      %264 = vmatprep.subr.bf16.mxu0 0
      %265 = vmatpush1.bf16.msra.mxu0 0
      %266 = vmatprep.subr.bf16.mxu0 0
      %267 = vmatpush1.bf16.msra.mxu0 0
      %268 = vmatprep.subr.bf16.mxu0 0
      %269 = vmatpush1.bf16.msra.mxu0 0
      %270 = vmatprep.subr.bf16.mxu0 0
      %271 = vmatpush1.bf16.msra.mxu0 0
      %272 = vmatprep.subr.bf16.mxu0 0
      %273 = vmatpush1.bf16.msra.mxu0 0
      %274 = vmatprep.subr.bf16.mxu0 0
      %275 = vmatpush1.bf16.msra.mxu0 0
      %276 = vmatprep.subr.bf16.mxu0 0
      %277 = vmatpush1.bf16.msra.mxu0 0
      %278 = vmatprep.subr.bf16.mxu0 0
      %279 = vmatpush1.bf16.msra.mxu0 0
      %280 = vmatprep.mubr.bf16.mxu0 0
      %281 = vmatmul.mubr.bf16.gmra.mrb[0].mxu0 %v236
      %v282 = vpop.f32.mrb[0].mxu0
      %v283 = vadd.f32 0.0, %v282
      %v284 = vpop.f32.mrb[0].mxu0
      %v285 = vadd.f32 0.0, %v284
      %v286 = vpop.f32.mrb[0].mxu0
      %v287 = vpop.f32.mrb[0].mxu0
      %288 = vdwg.mxu0
      %289 = vmatprep.subr.bf16.mxu0 0
      %290 = vmatpush1.bf16.msra.mxu0 %v246
      %291 = vmatprep.subr.bf16.mxu0 0
      %292 = vmatpush1.bf16.msra.mxu0 0
      %293 = vmatprep.subr.bf16.mxu0 0
      %294 = vmatpush1.bf16.msra.mxu0 0
      %295 = vmatprep.subr.bf16.mxu0 0
      %296 = vmatpush1.bf16.msra.mxu0 0
      %297 = vmatprep.subr.bf16.mxu0 0
      %298 = vmatpush1.bf16.msra.mxu0 0
      %299 = vmatprep.subr.bf16.mxu0 0
      %300 = vmatpush1.bf16.msra.mxu0 0
      %301 = vmatprep.subr.bf16.mxu0 0
      %302 = vmatpush1.bf16.msra.mxu0 0
      %303 = vmatprep.subr.bf16.mxu0 0
      %304 = vmatpush1.bf16.msra.mxu0 0
      %305 = vmatprep.subr.bf16.mxu0 0
      %306 = vmatpush1.bf16.msra.mxu0 0
      %307 = vmatprep.subr.bf16.mxu0 0
      %308 = vmatpush1.bf16.msra.mxu0 0
      %309 = vmatprep.subr.bf16.mxu0 0
      %310 = vmatpush1.bf16.msra.mxu0 0
      %311 = vmatprep.subr.bf16.mxu0 0
      %312 = vmatpush1.bf16.msra.mxu0 0
      %313 = vmatprep.subr.bf16.mxu0 0
      %314 = vmatpush1.bf16.msra.mxu0 0
      %315 = vmatprep.subr.bf16.mxu0 0
      %316 = vmatpush1.bf16.msra.mxu0 0
      %317 = vmatprep.subr.bf16.mxu0 0
      %318 = vmatpush1.bf16.msra.mxu0 0
      %319 = vmatprep.subr.bf16.mxu0 0
      %320 = vmatpush1.bf16.msra.mxu0 0
      %321 = vmatprep.mubr.bf16.mxu0 0
      %322 = vmatmul.mubr.bf16.gmra.mrb[0].mxu0 %v236
      %v323 = vpop.f32.mrb[0].mxu0
      %v324 = vadd.f32 0.0, %v323
      %v325 = vpop.f32.mrb[0].mxu0
      %v326 = vpop.f32.mrb[0].mxu0
      %v327 = vpop.f32.mrb[0].mxu0
      %328 = vdwg.mxu0
      %v330 = vcombine.high %v199, %v199
      %v332 = vunpack.c.l.s4 1983009808
      %v333 = vunpack.c.0.s8 %v332
      %v334 = vlaneseq
      %v335 = vshrl.u32 %v334, 7
      %v336 = vsub.s32 %v333, %v335
      %v337 = vrot.slane %v199, %v336
      %v339 = vunpack.c.l.s4 1983009808
      %v340 = vunpack.c.0.s8 %v339
      %v341 = vlaneseq
      %v342 = vshrl.u32 %v341, 7
      %v343 = vsub.s32 %v340, %v342
      %v344 = vrot.slane %v330, %v343
      %v345 = vcombine.high %v337, %v337
      %v347 = vsel %vm234, %v200, 0
      %v350 = vsel %vm238, %v337, 0
      %v353 = vsel %vm238, %v345, 0
      %v356 = vsel %vm238, %v344, 0
      %358 = vmatprep.subr.bf16.mxu0 %v353
      %359 = vmatpush1.bf16.msra.mxu0 %v350
      %360 = vmatprep.subr.bf16.mxu0 0
      %361 = vmatpush1.bf16.msra.mxu0 0
      %362 = vmatprep.subr.bf16.mxu0 0
      %363 = vmatpush1.bf16.msra.mxu0 0
      %364 = vmatprep.subr.bf16.mxu0 0
      %365 = vmatpush1.bf16.msra.mxu0 0
      %366 = vmatprep.subr.bf16.mxu0 0
      %367 = vmatpush1.bf16.msra.mxu0 0
      %368 = vmatprep.subr.bf16.mxu0 0
      %369 = vmatpush1.bf16.msra.mxu0 0
      %370 = vmatprep.subr.bf16.mxu0 0
      %371 = vmatpush1.bf16.msra.mxu0 0
      %372 = vmatprep.subr.bf16.mxu0 0
      %373 = vmatpush1.bf16.msra.mxu0 0
      %374 = vmatprep.subr.bf16.mxu0 0
      %375 = vmatpush1.bf16.msra.mxu0 0
      %376 = vmatprep.subr.bf16.mxu0 0
      %377 = vmatpush1.bf16.msra.mxu0 0
      %378 = vmatprep.subr.bf16.mxu0 0
      %379 = vmatpush1.bf16.msra.mxu0 0
      %380 = vmatprep.subr.bf16.mxu0 0
      %381 = vmatpush1.bf16.msra.mxu0 0
      %382 = vmatprep.subr.bf16.mxu0 0
      %383 = vmatpush1.bf16.msra.mxu0 0
      %384 = vmatprep.subr.bf16.mxu0 0
      %385 = vmatpush1.bf16.msra.mxu0 0
      %386 = vmatprep.subr.bf16.mxu0 0
      %387 = vmatpush1.bf16.msra.mxu0 0
      %388 = vmatprep.subr.bf16.mxu0 0
      %389 = vmatpush1.bf16.msra.mxu0 0
      %390 = vmatprep.mubr.bf16.mxu0 0
      %391 = vmatmul.mubr.bf16.gmra.mrb[0].mxu0 %v347
      %v392 = vpop.f32.mrb[0].mxu0
      %v393 = vadd.f32 %v283, %v392
      %v394 = vpop.f32.mrb[0].mxu0
      %v395 = vadd.f32 %v285, %v394
      %v396 = vpop.f32.mrb[0].mxu0
      %v397 = vpop.f32.mrb[0].mxu0
      %398 = vdwg.mxu0
      %399 = vmatprep.subr.bf16.mxu0 0
      %400 = vmatpush1.bf16.msra.mxu0 %v356
      %401 = vmatprep.subr.bf16.mxu0 0
      %402 = vmatpush1.bf16.msra.mxu0 0
      %403 = vmatprep.subr.bf16.mxu0 0
      %404 = vmatpush1.bf16.msra.mxu0 0
      %405 = vmatprep.subr.bf16.mxu0 0
      %406 = vmatpush1.bf16.msra.mxu0 0
      %407 = vmatprep.subr.bf16.mxu0 0
      %408 = vmatpush1.bf16.msra.mxu0 0
      %409 = vmatprep.subr.bf16.mxu0 0
      %410 = vmatpush1.bf16.msra.mxu0 0
      %411 = vmatprep.subr.bf16.mxu0 0
      %412 = vmatpush1.bf16.msra.mxu0 0
      %413 = vmatprep.subr.bf16.mxu0 0
      %414 = vmatpush1.bf16.msra.mxu0 0
      %415 = vmatprep.subr.bf16.mxu0 0
      %416 = vmatpush1.bf16.msra.mxu0 0
      %417 = vmatprep.subr.bf16.mxu0 0
      %418 = vmatpush1.bf16.msra.mxu0 0
      %419 = vmatprep.subr.bf16.mxu0 0
      %420 = vmatpush1.bf16.msra.mxu0 0
      %421 = vmatprep.subr.bf16.mxu0 0
      %422 = vmatpush1.bf16.msra.mxu0 0
      %423 = vmatprep.subr.bf16.mxu0 0
      %424 = vmatpush1.bf16.msra.mxu0 0
      %425 = vmatprep.subr.bf16.mxu0 0
      %426 = vmatpush1.bf16.msra.mxu0 0
      %427 = vmatprep.subr.bf16.mxu0 0
      %428 = vmatpush1.bf16.msra.mxu0 0
      %429 = vmatprep.subr.bf16.mxu0 0
      %430 = vmatpush1.bf16.msra.mxu0 0
      %431 = vmatprep.mubr.bf16.mxu0 0
      %432 = vmatmul.mubr.bf16.gmra.mrb[0].mxu0 %v347
      %v433 = vpop.f32.mrb[0].mxu0
      %v434 = vadd.f32 %v324, %v433
      %v435 = vpop.f32.mrb[0].mxu0
      %v436 = vpop.f32.mrb[0].mxu0
      %v437 = vpop.f32.mrb[0].mxu0
      %438 = vdwg.mxu0
      %v439 = vld [vmem:[%s192] sm:$0xff]
      %s440 = scalar_lea.vmem %s1, 8
      %v441 = vld [vmem:[%s440] sm:$0xf]
      %v443 = vcombine.high %v439, %v439
      %v445 = vunpack.c.l.s4 1983009808
      %v446 = vunpack.c.0.s8 %v445
      %v447 = vlaneseq
      %v448 = vshrl.u32 %v447, 7
      %v449 = vsub.s32 %v446, %v448
      %v450 = vrot.slane %v439, %v449
      %v452 = vunpack.c.l.s4 1983009808
      %v453 = vunpack.c.0.s8 %v452
      %v454 = vlaneseq
      %v455 = vshrl.u32 %v454, 7
      %v456 = vsub.s32 %v453, %v455
      %v457 = vrot.slane %v443, %v456
      %v458 = vcombine.high %v450, %v450
      %v459 = vcombine.high %v457, %v457
      %460 = vrot.lane.b32.xlu0 %v450, 126
      %v461 = vpop.permute.xlu0 %460
      %462 = vrot.lane.b32.xlu0 %v458, 126
      %v463 = vpop.permute.xlu0 %462
      %464 = vrot.lane.b32.xlu0 %v457, 126
      %v465 = vpop.permute.xlu0 %464
      %466 = vrot.lane.b32.xlu0 %v459, 126
      %v467 = vpop.permute.xlu0 %466
      %vm468 = vcmask 1031168
      %v469 = vsel %vm468, %v461, %v463
      %v470 = vsel %vm468, %v463, %v465
      %v471 = vsel %vm468, %v465, %v467
      %v473 = vsel %vm234, %v441, 0
      %v476 = vsel %vm238, %v469, 0
      %v479 = vsel %vm238, %v470, 0
      %v482 = vsel %vm238, %v471, 0
      %484 = vmatprep.subr.bf16.mxu0 %v479
      %485 = vmatpush1.bf16.msra.mxu0 %v476
      %486 = vmatprep.subr.bf16.mxu0 0
      %487 = vmatpush1.bf16.msra.mxu0 0
      %488 = vmatprep.subr.bf16.mxu0 0
      %489 = vmatpush1.bf16.msra.mxu0 0
      %490 = vmatprep.subr.bf16.mxu0 0
      %491 = vmatpush1.bf16.msra.mxu0 0
      %492 = vmatprep.subr.bf16.mxu0 0
      %493 = vmatpush1.bf16.msra.mxu0 0
      %494 = vmatprep.subr.bf16.mxu0 0
      %495 = vmatpush1.bf16.msra.mxu0 0
      %496 = vmatprep.subr.bf16.mxu0 0
      %497 = vmatpush1.bf16.msra.mxu0 0
      %498 = vmatprep.subr.bf16.mxu0 0
      %499 = vmatpush1.bf16.msra.mxu0 0
      %500 = vmatprep.subr.bf16.mxu0 0
      %501 = vmatpush1.bf16.msra.mxu0 0
      %502 = vmatprep.subr.bf16.mxu0 0
      %503 = vmatpush1.bf16.msra.mxu0 0
      %504 = vmatprep.subr.bf16.mxu0 0
      %505 = vmatpush1.bf16.msra.mxu0 0
      %506 = vmatprep.subr.bf16.mxu0 0
      %507 = vmatpush1.bf16.msra.mxu0 0
      %508 = vmatprep.subr.bf16.mxu0 0
      %509 = vmatpush1.bf16.msra.mxu0 0
      %510 = vmatprep.subr.bf16.mxu0 0
      %511 = vmatpush1.bf16.msra.mxu0 0
      %512 = vmatprep.subr.bf16.mxu0 0
      %513 = vmatpush1.bf16.msra.mxu0 0
      %514 = vmatprep.subr.bf16.mxu0 0
      %515 = vmatpush1.bf16.msra.mxu0 0
      %516 = vmatprep.mubr.bf16.mxu0 0
      %517 = vmatmul.mubr.bf16.gmra.mrb[0].mxu0 %v473
      %v518 = vpop.f32.mrb[0].mxu0
      %v519 = vadd.f32 0.0, %v518
      %v520 = vpop.f32.mrb[0].mxu0
      %v521 = vadd.f32 0.0, %v520
      %v522 = vpop.f32.mrb[0].mxu0
      %v523 = vpop.f32.mrb[0].mxu0
      %524 = vdwg.mxu0
      %525 = vmatprep.subr.bf16.mxu0 0
      %526 = vmatpush1.bf16.msra.mxu0 %v482
      %527 = vmatprep.subr.bf16.mxu0 0
      %528 = vmatpush1.bf16.msra.mxu0 0
      %529 = vmatprep.subr.bf16.mxu0 0
      %530 = vmatpush1.bf16.msra.mxu0 0
      %531 = vmatprep.subr.bf16.mxu0 0
      %532 = vmatpush1.bf16.msra.mxu0 0
      %533 = vmatprep.subr.bf16.mxu0 0
      %534 = vmatpush1.bf16.msra.mxu0 0
      %535 = vmatprep.subr.bf16.mxu0 0
      %536 = vmatpush1.bf16.msra.mxu0 0
      %537 = vmatprep.subr.bf16.mxu0 0
      %538 = vmatpush1.bf16.msra.mxu0 0
      %539 = vmatprep.subr.bf16.mxu0 0
      %540 = vmatpush1.bf16.msra.mxu0 0
      %541 = vmatprep.subr.bf16.mxu0 0
      %542 = vmatpush1.bf16.msra.mxu0 0
      %543 = vmatprep.subr.bf16.mxu0 0
      %544 = vmatpush1.bf16.msra.mxu0 0
      %545 = vmatprep.subr.bf16.mxu0 0
      %546 = vmatpush1.bf16.msra.mxu0 0
      %547 = vmatprep.subr.bf16.mxu0 0
      %548 = vmatpush1.bf16.msra.mxu0 0
      %549 = vmatprep.subr.bf16.mxu0 0
      %550 = vmatpush1.bf16.msra.mxu0 0
      %551 = vmatprep.subr.bf16.mxu0 0
      %552 = vmatpush1.bf16.msra.mxu0 0
      %553 = vmatprep.subr.bf16.mxu0 0
      %554 = vmatpush1.bf16.msra.mxu0 0
      %555 = vmatprep.subr.bf16.mxu0 0
      %556 = vmatpush1.bf16.msra.mxu0 0
      %557 = vmatprep.mubr.bf16.mxu0 0
      %558 = vmatmul.mubr.bf16.gmra.mrb[0].mxu0 %v473
      %v559 = vpop.f32.mrb[0].mxu0
      %v560 = vadd.f32 0.0, %v559
      %v561 = vpop.f32.mrb[0].mxu0
      %v562 = vpop.f32.mrb[0].mxu0
      %v563 = vpop.f32.mrb[0].mxu0
      %564 = vdwg.mxu0
      %v565 = vadd.f32 %v393, %v519
      %v566 = vadd.f32 %v395, %v521
      %v567 = vadd.f32 %v434, %v560
      %v568 = vld [vmem:[%s192] sm:$0xff]
      %s569 = scalar_lea.vmem %s1, 12
      %v570 = vld [vmem:[%s569] sm:$0xf]
      %v572 = vcombine.high %v568, %v568
      %v574 = vunpack.c.l.s4 1983009808
      %v575 = vunpack.c.0.s8 %v574
      %v576 = vlaneseq
      %v577 = vshrl.u32 %v576, 7
      %v578 = vsub.s32 %v575, %v577
      %v579 = vrot.slane %v568, %v578
      %v581 = vunpack.c.l.s4 1983009808
      %v582 = vunpack.c.0.s8 %v581
      %v583 = vlaneseq
      %v584 = vshrl.u32 %v583, 7
      %v585 = vsub.s32 %v582, %v584
      %v586 = vrot.slane %v572, %v585
      %v587 = vcombine.high %v579, %v579
      %v588 = vcombine.high %v586, %v586
      %589 = vrot.lane.b32.xlu0 %v579, 110
      %v590 = vpop.permute.xlu0 %589
      %591 = vrot.lane.b32.xlu0 %v587, 110
      %v592 = vpop.permute.xlu0 %591
      %593 = vrot.lane.b32.xlu0 %v586, 110
      %v594 = vpop.permute.xlu0 %593
      %595 = vrot.lane.b32.xlu0 %v588, 110
      %v596 = vpop.permute.xlu0 %595
      %vm597 = vcmask 900096
      %v598 = vsel %vm597, %v590, %v592
      %v599 = vsel %vm597, %v592, %v594
      %v600 = vsel %vm597, %v594, %v596
      %v602 = vsel %vm234, %v570, 0
      %v605 = vsel %vm238, %v598, 0
      %v608 = vsel %vm238, %v599, 0
      %v611 = vsel %vm238, %v600, 0
      %613 = vmatprep.subr.bf16.mxu0 %v608
      %614 = vmatpush1.bf16.msra.mxu0 %v605
      %615 = vmatprep.subr.bf16.mxu0 0
      %616 = vmatpush1.bf16.msra.mxu0 0
      %617 = vmatprep.subr.bf16.mxu0 0
      %618 = vmatpush1.bf16.msra.mxu0 0
      %619 = vmatprep.subr.bf16.mxu0 0
      %620 = vmatpush1.bf16.msra.mxu0 0
      %621 = vmatprep.subr.bf16.mxu0 0
      %622 = vmatpush1.bf16.msra.mxu0 0
      %623 = vmatprep.subr.bf16.mxu0 0
      %624 = vmatpush1.bf16.msra.mxu0 0
      %625 = vmatprep.subr.bf16.mxu0 0
      %626 = vmatpush1.bf16.msra.mxu0 0
      %627 = vmatprep.subr.bf16.mxu0 0
      %628 = vmatpush1.bf16.msra.mxu0 0
      %629 = vmatprep.subr.bf16.mxu0 0
      %630 = vmatpush1.bf16.msra.mxu0 0
      %631 = vmatprep.subr.bf16.mxu0 0
      %632 = vmatpush1.bf16.msra.mxu0 0
      %633 = vmatprep.subr.bf16.mxu0 0
      %634 = vmatpush1.bf16.msra.mxu0 0
      %635 = vmatprep.subr.bf16.mxu0 0
      %636 = vmatpush1.bf16.msra.mxu0 0
      %637 = vmatprep.subr.bf16.mxu0 0
      %638 = vmatpush1.bf16.msra.mxu0 0
      %639 = vmatprep.subr.bf16.mxu0 0
      %640 = vmatpush1.bf16.msra.mxu0 0
      %641 = vmatprep.subr.bf16.mxu0 0
      %642 = vmatpush1.bf16.msra.mxu0 0
      %643 = vmatprep.subr.bf16.mxu0 0
      %644 = vmatpush1.bf16.msra.mxu0 0
      %645 = vmatprep.mubr.bf16.mxu0 0
      %646 = vmatmul.mubr.bf16.gmra.mrb[0].mxu0 %v602
      %v647 = vpop.f32.mrb[0].mxu0
      %v648 = vadd.f32 0.0, %v647
      %v649 = vpop.f32.mrb[0].mxu0
      %v650 = vadd.f32 0.0, %v649
      %v651 = vpop.f32.mrb[0].mxu0
      %v652 = vpop.f32.mrb[0].mxu0
      %653 = vdwg.mxu0
      %654 = vmatprep.subr.bf16.mxu0 0
      %655 = vmatpush1.bf16.msra.mxu0 %v611
      %656 = vmatprep.subr.bf16.mxu0 0
      %657 = vmatpush1.bf16.msra.mxu0 0
      %658 = vmatprep.subr.bf16.mxu0 0
      %659 = vmatpush1.bf16.msra.mxu0 0
      %660 = vmatprep.subr.bf16.mxu0 0
      %661 = vmatpush1.bf16.msra.mxu0 0
      %662 = vmatprep.subr.bf16.mxu0 0
      %663 = vmatpush1.bf16.msra.mxu0 0
      %664 = vmatprep.subr.bf16.mxu0 0
      %665 = vmatpush1.bf16.msra.mxu0 0
      %666 = vmatprep.subr.bf16.mxu0 0
      %667 = vmatpush1.bf16.msra.mxu0 0
      %668 = vmatprep.subr.bf16.mxu0 0
      %669 = vmatpush1.bf16.msra.mxu0 0
      %670 = vmatprep.subr.bf16.mxu0 0
      %671 = vmatpush1.bf16.msra.mxu0 0
      %672 = vmatprep.subr.bf16.mxu0 0
      %673 = vmatpush1.bf16.msra.mxu0 0
      %674 = vmatprep.subr.bf16.mxu0 0
      %675 = vmatpush1.bf16.msra.mxu0 0
      %676 = vmatprep.subr.bf16.mxu0 0
      %677 = vmatpush1.bf16.msra.mxu0 0
      %678 = vmatprep.subr.bf16.mxu0 0
      %679 = vmatpush1.bf16.msra.mxu0 0
      %680 = vmatprep.subr.bf16.mxu0 0
      %681 = vmatpush1.bf16.msra.mxu0 0
      %682 = vmatprep.subr.bf16.mxu0 0
      %683 = vmatpush1.bf16.msra.mxu0 0
      %684 = vmatprep.subr.bf16.mxu0 0
      %685 = vmatpush1.bf16.msra.mxu0 0
      %686 = vmatprep.mubr.bf16.mxu0 0
      %687 = vmatmul.mubr.bf16.gmra.mrb[0].mxu0 %v602
      %v688 = vpop.f32.mrb[0].mxu0
      %v689 = vadd.f32 0.0, %v688
      %v690 = vpop.f32.mrb[0].mxu0
      %v691 = vpop.f32.mrb[0].mxu0
      %v692 = vpop.f32.mrb[0].mxu0
      %693 = vdwg.mxu0
      %v694 = vadd.f32 %v565, %v648
      %v695 = vadd.f32 %v566, %v650
      %v696 = vadd.f32 %v567, %v689
      %v697 = vld [vmem:[%s192] sm:$0xff]
      %s698 = scalar_lea.vmem %s1, 16
      %v699 = vld [vmem:[%s698] sm:$0xf]
      %v701 = vcombine.high %v697, %v697
      %v703 = vunpack.c.l.s4 1983009808
      %v704 = vunpack.c.0.s8 %v703
      %v705 = vlaneseq
      %v706 = vshrl.u32 %v705, 7
      %v707 = vsub.s32 %v704, %v706
      %v708 = vrot.slane %v697, %v707
      %v710 = vunpack.c.l.s4 1983009808
      %v711 = vunpack.c.0.s8 %v710
      %v712 = vlaneseq
      %v713 = vshrl.u32 %v712, 7
      %v714 = vsub.s32 %v711, %v713
      %v715 = vrot.slane %v701, %v714
      %v716 = vcombine.high %v708, %v708
      %v717 = vcombine.high %v715, %v715
      %718 = vrot.lane.b32.xlu0 %v708, 109
      %v719 = vpop.permute.xlu0 %718
      %720 = vrot.lane.b32.xlu0 %v716, 109
      %v721 = vpop.permute.xlu0 %720
      %722 = vrot.lane.b32.xlu0 %v715, 109
      %v723 = vpop.permute.xlu0 %722
      %724 = vrot.lane.b32.xlu0 %v717, 109
      %v725 = vpop.permute.xlu0 %724
      %vm726 = vcmask 891904
      %v727 = vsel %vm726, %v719, %v721
      %v728 = vsel %vm726, %v721, %v723
      %v729 = vsel %vm726, %v723, %v725
      %v731 = vsel %vm234, %v699, 0
      %v734 = vsel %vm238, %v727, 0
      %v737 = vsel %vm238, %v728, 0
      %v740 = vsel %vm238, %v729, 0
      %742 = vmatprep.subr.bf16.mxu0 %v737
      %743 = vmatpush1.bf16.msra.mxu0 %v734
      %744 = vmatprep.subr.bf16.mxu0 0
      %745 = vmatpush1.bf16.msra.mxu0 0
      %746 = vmatprep.subr.bf16.mxu0 0
      %747 = vmatpush1.bf16.msra.mxu0 0
      %748 = vmatprep.subr.bf16.mxu0 0
      %749 = vmatpush1.bf16.msra.mxu0 0
      %750 = vmatprep.subr.bf16.mxu0 0
      %751 = vmatpush1.bf16.msra.mxu0 0
      %752 = vmatprep.subr.bf16.mxu0 0
      %753 = vmatpush1.bf16.msra.mxu0 0
      %754 = vmatprep.subr.bf16.mxu0 0
      %755 = vmatpush1.bf16.msra.mxu0 0
      %756 = vmatprep.subr.bf16.mxu0 0
      %757 = vmatpush1.bf16.msra.mxu0 0
      %758 = vmatprep.subr.bf16.mxu0 0
      %759 = vmatpush1.bf16.msra.mxu0 0
      %760 = vmatprep.subr.bf16.mxu0 0
      %761 = vmatpush1.bf16.msra.mxu0 0
      %762 = vmatprep.subr.bf16.mxu0 0
      %763 = vmatpush1.bf16.msra.mxu0 0
      %764 = vmatprep.subr.bf16.mxu0 0
      %765 = vmatpush1.bf16.msra.mxu0 0
      %766 = vmatprep.subr.bf16.mxu0 0
      %767 = vmatpush1.bf16.msra.mxu0 0
      %768 = vmatprep.subr.bf16.mxu0 0
      %769 = vmatpush1.bf16.msra.mxu0 0
      %770 = vmatprep.subr.bf16.mxu0 0
      %771 = vmatpush1.bf16.msra.mxu0 0
      %772 = vmatprep.subr.bf16.mxu0 0
      %773 = vmatpush1.bf16.msra.mxu0 0
      %774 = vmatprep.mubr.bf16.mxu0 0
      %775 = vmatmul.mubr.bf16.gmra.mrb[0].mxu0 %v731
      %v776 = vpop.f32.mrb[0].mxu0
      %v777 = vadd.f32 0.0, %v776
      %v778 = vpop.f32.mrb[0].mxu0
      %v779 = vadd.f32 0.0, %v778
      %v780 = vpop.f32.mrb[0].mxu0
      %v781 = vpop.f32.mrb[0].mxu0
      %782 = vdwg.mxu0
      %783 = vmatprep.subr.bf16.mxu0 0
      %784 = vmatpush1.bf16.msra.mxu0 %v740
      %785 = vmatprep.subr.bf16.mxu0 0
      %786 = vmatpush1.bf16.msra.mxu0 0
      %787 = vmatprep.subr.bf16.mxu0 0
      %788 = vmatpush1.bf16.msra.mxu0 0
      %789 = vmatprep.subr.bf16.mxu0 0
      %790 = vmatpush1.bf16.msra.mxu0 0
      %791 = vmatprep.subr.bf16.mxu0 0
      %792 = vmatpush1.bf16.msra.mxu0 0
      %793 = vmatprep.subr.bf16.mxu0 0
      %794 = vmatpush1.bf16.msra.mxu0 0
      %795 = vmatprep.subr.bf16.mxu0 0
      %796 = vmatpush1.bf16.msra.mxu0 0
      %797 = vmatprep.subr.bf16.mxu0 0
      %798 = vmatpush1.bf16.msra.mxu0 0
      %799 = vmatprep.subr.bf16.mxu0 0
      %800 = vmatpush1.bf16.msra.mxu0 0
      %801 = vmatprep.subr.bf16.mxu0 0
      %802 = vmatpush1.bf16.msra.mxu0 0
      %803 = vmatprep.subr.bf16.mxu0 0
      %804 = vmatpush1.bf16.msra.mxu0 0
      %805 = vmatprep.subr.bf16.mxu0 0
      %806 = vmatpush1.bf16.msra.mxu0 0
      %807 = vmatprep.subr.bf16.mxu0 0
      %808 = vmatpush1.bf16.msra.mxu0 0
      %809 = vmatprep.subr.bf16.mxu0 0
      %810 = vmatpush1.bf16.msra.mxu0 0
      %811 = vmatprep.subr.bf16.mxu0 0
      %812 = vmatpush1.bf16.msra.mxu0 0
      %813 = vmatprep.subr.bf16.mxu0 0
      %814 = vmatpush1.bf16.msra.mxu0 0
      %815 = vmatprep.mubr.bf16.mxu0 0
      %816 = vmatmul.mubr.bf16.gmra.mrb[0].mxu0 %v731
      %v817 = vpop.f32.mrb[0].mxu0
      %v818 = vadd.f32 0.0, %v817
      %v819 = vpop.f32.mrb[0].mxu0
      %v820 = vpop.f32.mrb[0].mxu0
      %v821 = vpop.f32.mrb[0].mxu0
      %822 = vdwg.mxu0
      %v823 = vadd.f32 %v694, %v777
      %v824 = vadd.f32 %v695, %v779
      %v825 = vadd.f32 %v696, %v818
      %v826 = vld [vmem:[%s192] sm:$0xff]
      %s827 = scalar_lea.vmem %s1, 20
      %v828 = vld [vmem:[%s827] sm:$0xf]
      %v830 = vcombine.high %v826, %v826
      %v832 = vunpack.c.l.s4 1983009808
      %v833 = vunpack.c.0.s8 %v832
      %v834 = vlaneseq
      %v835 = vshrl.u32 %v834, 7
      %v836 = vsub.s32 %v833, %v835
      %v837 = vrot.slane %v826, %v836
      %v839 = vunpack.c.l.s4 1983009808
      %v840 = vunpack.c.0.s8 %v839
      %v841 = vlaneseq
      %v842 = vshrl.u32 %v841, 7
      %v843 = vsub.s32 %v840, %v842
      %v844 = vrot.slane %v830, %v843
      %v845 = vcombine.high %v837, %v837
      %v846 = vcombine.high %v844, %v844
      %847 = vrot.lane.b32.xlu0 %v837, 108
      %v848 = vpop.permute.xlu0 %847
      %849 = vrot.lane.b32.xlu0 %v845, 108
      %v850 = vpop.permute.xlu0 %849
      %851 = vrot.lane.b32.xlu0 %v844, 108
      %v852 = vpop.permute.xlu0 %851
      %853 = vrot.lane.b32.xlu0 %v846, 108
      %v854 = vpop.permute.xlu0 %853
      %vm855 = vcmask 883712
      %v856 = vsel %vm855, %v848, %v850
      %v857 = vsel %vm855, %v850, %v852
      %v858 = vsel %vm855, %v852, %v854
      %v860 = vsel %vm234, %v828, 0
      %v863 = vsel %vm238, %v856, 0
      %v866 = vsel %vm238, %v857, 0
      %v869 = vsel %vm238, %v858, 0
      %871 = vmatprep.subr.bf16.mxu0 %v866
      %872 = vmatpush1.bf16.msra.mxu0 %v863
      %873 = vmatprep.subr.bf16.mxu0 0
      %874 = vmatpush1.bf16.msra.mxu0 0
      %875 = vmatprep.subr.bf16.mxu0 0
      %876 = vmatpush1.bf16.msra.mxu0 0
      %877 = vmatprep.subr.bf16.mxu0 0
      %878 = vmatpush1.bf16.msra.mxu0 0
      %879 = vmatprep.subr.bf16.mxu0 0
      %880 = vmatpush1.bf16.msra.mxu0 0
      %881 = vmatprep.subr.bf16.mxu0 0
      %882 = vmatpush1.bf16.msra.mxu0 0
      %883 = vmatprep.subr.bf16.mxu0 0
      %884 = vmatpush1.bf16.msra.mxu0 0
      %885 = vmatprep.subr.bf16.mxu0 0
      %886 = vmatpush1.bf16.msra.mxu0 0
      %887 = vmatprep.subr.bf16.mxu0 0
      %888 = vmatpush1.bf16.msra.mxu0 0
      %889 = vmatprep.subr.bf16.mxu0 0
      %890 = vmatpush1.bf16.msra.mxu0 0
      %891 = vmatprep.subr.bf16.mxu0 0
      %892 = vmatpush1.bf16.msra.mxu0 0
      %893 = vmatprep.subr.bf16.mxu0 0
      %894 = vmatpush1.bf16.msra.mxu0 0
      %895 = vmatprep.subr.bf16.mxu0 0
      %896 = vmatpush1.bf16.msra.mxu0 0
      %897 = vmatprep.subr.bf16.mxu0 0
      %898 = vmatpush1.bf16.msra.mxu0 0
      %899 = vmatprep.subr.bf16.mxu0 0
      %900 = vmatpush1.bf16.msra.mxu0 0
      %901 = vmatprep.subr.bf16.mxu0 0
      %902 = vmatpush1.bf16.msra.mxu0 0
      %903 = vmatprep.mubr.bf16.mxu0 0
      %904 = vmatmul.mubr.bf16.gmra.mrb[0].mxu0 %v860
      %v905 = vpop.f32.mrb[0].mxu0
      %v906 = vadd.f32 0.0, %v905
      %v907 = vpop.f32.mrb[0].mxu0
      %v908 = vadd.f32 0.0, %v907
      %v909 = vpop.f32.mrb[0].mxu0
      %v910 = vpop.f32.mrb[0].mxu0
      %911 = vdwg.mxu0
      %912 = vmatprep.subr.bf16.mxu0 0
      %913 = vmatpush1.bf16.msra.mxu0 %v869
      %914 = vmatprep.subr.bf16.mxu0 0
      %915 = vmatpush1.bf16.msra.mxu0 0
      %916 = vmatprep.subr.bf16.mxu0 0
      %917 = vmatpush1.bf16.msra.mxu0 0
      %918 = vmatprep.subr.bf16.mxu0 0
      %919 = vmatpush1.bf16.msra.mxu0 0
      %920 = vmatprep.subr.bf16.mxu0 0
      %921 = vmatpush1.bf16.msra.mxu0 0
      %922 = vmatprep.subr.bf16.mxu0 0
      %923 = vmatpush1.bf16.msra.mxu0 0
      %924 = vmatprep.subr.bf16.mxu0 0
      %925 = vmatpush1.bf16.msra.mxu0 0
      %926 = vmatprep.subr.bf16.mxu0 0
      %927 = vmatpush1.bf16.msra.mxu0 0
      %928 = vmatprep.subr.bf16.mxu0 0
      %929 = vmatpush1.bf16.msra.mxu0 0
      %930 = vmatprep.subr.bf16.mxu0 0
      %931 = vmatpush1.bf16.msra.mxu0 0
      %932 = vmatprep.subr.bf16.mxu0 0
      %933 = vmatpush1.bf16.msra.mxu0 0
      %934 = vmatprep.subr.bf16.mxu0 0
      %935 = vmatpush1.bf16.msra.mxu0 0
      %936 = vmatprep.subr.bf16.mxu0 0
      %937 = vmatpush1.bf16.msra.mxu0 0
      %938 = vmatprep.subr.bf16.mxu0 0
      %939 = vmatpush1.bf16.msra.mxu0 0
      %940 = vmatprep.subr.bf16.mxu0 0
      %941 = vmatpush1.bf16.msra.mxu0 0
      %942 = vmatprep.subr.bf16.mxu0 0
      %943 = vmatpush1.bf16.msra.mxu0 0
      %944 = vmatprep.mubr.bf16.mxu0 0
      %945 = vmatmul.mubr.bf16.gmra.mrb[0].mxu0 %v860
      %v946 = vpop.f32.mrb[0].mxu0
      %v947 = vadd.f32 0.0, %v946
      %v948 = vpop.f32.mrb[0].mxu0
      %v949 = vpop.f32.mrb[0].mxu0
      %v950 = vpop.f32.mrb[0].mxu0
      %951 = vdwg.mxu0
      %v952 = vadd.f32 %v823, %v906
      %v953 = vadd.f32 %v824, %v908
      %v954 = vadd.f32 %v825, %v947
      %v955 = vld [vmem:[%s192] sm:$0xff]
      %s956 = scalar_lea.vmem %s1, 24
      %v957 = vld [vmem:[%s956] sm:$0xf]
      %v959 = vcombine.high %v955, %v955
      %v961 = vunpack.c.l.s4 1983009808
      %v962 = vunpack.c.0.s8 %v961
      %v963 = vlaneseq
      %v964 = vshrl.u32 %v963, 7
      %v965 = vsub.s32 %v962, %v964
      %v966 = vrot.slane %v955, %v965
      %v968 = vunpack.c.l.s4 1983009808
      %v969 = vunpack.c.0.s8 %v968
      %v970 = vlaneseq
      %v971 = vshrl.u32 %v970, 7
      %v972 = vsub.s32 %v969, %v971
      %v973 = vrot.slane %v959, %v972
      %v974 = vcombine.high %v966, %v966
      %v975 = vcombine.high %v973, %v973
      %976 = vrot.lane.b32.xlu0 %v966, 92
      %v977 = vpop.permute.xlu0 %976
      %978 = vrot.lane.b32.xlu0 %v974, 92
      %v979 = vpop.permute.xlu0 %978
      %980 = vrot.lane.b32.xlu0 %v973, 92
      %v981 = vpop.permute.xlu0 %980
      %982 = vrot.lane.b32.xlu0 %v975, 92
      %v983 = vpop.permute.xlu0 %982
      %vm984 = vcmask 752640
      %v985 = vsel %vm984, %v977, %v979
      %v986 = vsel %vm984, %v979, %v981
      %v987 = vsel %vm984, %v981, %v983
      %v989 = vsel %vm234, %v957, 0
      %v992 = vsel %vm238, %v985, 0
      %v995 = vsel %vm238, %v986, 0
      %v998 = vsel %vm238, %v987, 0
      %1000 = vmatprep.subr.bf16.mxu0 %v995
      %1001 = vmatpush1.bf16.msra.mxu0 %v992
      %1002 = vmatprep.subr.bf16.mxu0 0
      %1003 = vmatpush1.bf16.msra.mxu0 0
      %1004 = vmatprep.subr.bf16.mxu0 0
      %1005 = vmatpush1.bf16.msra.mxu0 0
      %1006 = vmatprep.subr.bf16.mxu0 0
      %1007 = vmatpush1.bf16.msra.mxu0 0
      %1008 = vmatprep.subr.bf16.mxu0 0
      %1009 = vmatpush1.bf16.msra.mxu0 0
      %1010 = vmatprep.subr.bf16.mxu0 0
      %1011 = vmatpush1.bf16.msra.mxu0 0
      %1012 = vmatprep.subr.bf16.mxu0 0
      %1013 = vmatpush1.bf16.msra.mxu0 0
      %1014 = vmatprep.subr.bf16.mxu0 0
      %1015 = vmatpush1.bf16.msra.mxu0 0
      %1016 = vmatprep.subr.bf16.mxu0 0
      %1017 = vmatpush1.bf16.msra.mxu0 0
      %1018 = vmatprep.subr.bf16.mxu0 0
      %1019 = vmatpush1.bf16.msra.mxu0 0
      %1020 = vmatprep.subr.bf16.mxu0 0
      %1021 = vmatpush1.bf16.msra.mxu0 0
      %1022 = vmatprep.subr.bf16.mxu0 0
      %1023 = vmatpush1.bf16.msra.mxu0 0
      %1024 = vmatprep.subr.bf16.mxu0 0
      %1025 = vmatpush1.bf16.msra.mxu0 0
      %1026 = vmatprep.subr.bf16.mxu0 0
      %1027 = vmatpush1.bf16.msra.mxu0 0
      %1028 = vmatprep.subr.bf16.mxu0 0
      %1029 = vmatpush1.bf16.msra.mxu0 0
      %1030 = vmatprep.subr.bf16.mxu0 0
      %1031 = vmatpush1.bf16.msra.mxu0 0
      %1032 = vmatprep.mubr.bf16.mxu0 0
      %1033 = vmatmul.mubr.bf16.gmra.mrb[0].mxu0 %v989
      %v1034 = vpop.f32.mrb[0].mxu0
      %v1035 = vadd.f32 0.0, %v1034
      %v1036 = vpop.f32.mrb[0].mxu0
      %v1037 = vadd.f32 0.0, %v1036
      %v1038 = vpop.f32.mrb[0].mxu0
      %v1039 = vpop.f32.mrb[0].mxu0
      %1040 = vdwg.mxu0
      %1041 = vmatprep.subr.bf16.mxu0 0
      %1042 = vmatpush1.bf16.msra.mxu0 %v998
      %1043 = vmatprep.subr.bf16.mxu0 0
      %1044 = vmatpush1.bf16.msra.mxu0 0
      %1045 = vmatprep.subr.bf16.mxu0 0
      %1046 = vmatpush1.bf16.msra.mxu0 0
      %1047 = vmatprep.subr.bf16.mxu0 0
      %1048 = vmatpush1.bf16.msra.mxu0 0
      %1049 = vmatprep.subr.bf16.mxu0 0
      %1050 = vmatpush1.bf16.msra.mxu0 0
      %1051 = vmatprep.subr.bf16.mxu0 0
      %1052 = vmatpush1.bf16.msra.mxu0 0
      %1053 = vmatprep.subr.bf16.mxu0 0
      %1054 = vmatpush1.bf16.msra.mxu0 0
      %1055 = vmatprep.subr.bf16.mxu0 0
      %1056 = vmatpush1.bf16.msra.mxu0 0
      %1057 = vmatprep.subr.bf16.mxu0 0
      %1058 = vmatpush1.bf16.msra.mxu0 0
      %1059 = vmatprep.subr.bf16.mxu0 0
      %1060 = vmatpush1.bf16.msra.mxu0 0
      %1061 = vmatprep.subr.bf16.mxu0 0
      %1062 = vmatpush1.bf16.msra.mxu0 0
      %1063 = vmatprep.subr.bf16.mxu0 0
      %1064 = vmatpush1.bf16.msra.mxu0 0
      %1065 = vmatprep.subr.bf16.mxu0 0
      %1066 = vmatpush1.bf16.msra.mxu0 0
      %1067 = vmatprep.subr.bf16.mxu0 0
      %1068 = vmatpush1.bf16.msra.mxu0 0
      %1069 = vmatprep.subr.bf16.mxu0 0
      %1070 = vmatpush1.bf16.msra.mxu0 0
      %1071 = vmatprep.subr.bf16.mxu0 0
      %1072 = vmatpush1.bf16.msra.mxu0 0
      %1073 = vmatprep.mubr.bf16.mxu0 0
      %1074 = vmatmul.mubr.bf16.gmra.mrb[0].mxu0 %v989
      %v1075 = vpop.f32.mrb[0].mxu0
      %v1076 = vadd.f32 0.0, %v1075
      %v1077 = vpop.f32.mrb[0].mxu0
      %v1078 = vpop.f32.mrb[0].mxu0
      %v1079 = vpop.f32.mrb[0].mxu0
      %1080 = vdwg.mxu0
      %v1081 = vadd.f32 %v952, %v1035
      %v1082 = vadd.f32 %v953, %v1037
      %v1083 = vadd.f32 %v954, %v1076
      %v1084 = vld [vmem:[%s192] sm:$0xff]
      %s1085 = scalar_lea.vmem %s1, 28
      %v1086 = vld [vmem:[%s1085] sm:$0xf]
      %v1088 = vcombine.high %v1084, %v1084
      %v1090 = vunpack.c.l.s4 1983009808
      %v1091 = vunpack.c.0.s8 %v1090
      %v1092 = vlaneseq
      %v1093 = vshrl.u32 %v1092, 7
      %v1094 = vsub.s32 %v1091, %v1093
      %v1095 = vrot.slane %v1084, %v1094
      %v1097 = vunpack.c.l.s4 1983009808
      %v1098 = vunpack.c.0.s8 %v1097
      %v1099 = vlaneseq
      %v1100 = vshrl.u32 %v1099, 7
      %v1101 = vsub.s32 %v1098, %v1100
      %v1102 = vrot.slane %v1088, %v1101
      %v1103 = vcombine.high %v1095, %v1095
      %v1104 = vcombine.high %v1102, %v1102
      %1105 = vrot.lane.b32.xlu0 %v1095, 91
      %v1106 = vpop.permute.xlu0 %1105
      %1107 = vrot.lane.b32.xlu0 %v1103, 91
      %v1108 = vpop.permute.xlu0 %1107
      %1109 = vrot.lane.b32.xlu0 %v1102, 91
      %v1110 = vpop.permute.xlu0 %1109
      %1111 = vrot.lane.b32.xlu0 %v1104, 91
      %v1112 = vpop.permute.xlu0 %1111
      %vm1113 = vcmask 744448
      %v1114 = vsel %vm1113, %v1106, %v1108
      %v1115 = vsel %vm1113, %v1108, %v1110
      %v1116 = vsel %vm1113, %v1110, %v1112
      %v1118 = vsel %vm234, %v1086, 0
      %v1121 = vsel %vm238, %v1114, 0
      %v1124 = vsel %vm238, %v1115, 0
      %v1127 = vsel %vm238, %v1116, 0
      %1129 = vmatprep.subr.bf16.mxu0 %v1124
      %1130 = vmatpush1.bf16.msra.mxu0 %v1121
      %1131 = vmatprep.subr.bf16.mxu0 0
      %1132 = vmatpush1.bf16.msra.mxu0 0
      %1133 = vmatprep.subr.bf16.mxu0 0
      %1134 = vmatpush1.bf16.msra.mxu0 0
      %1135 = vmatprep.subr.bf16.mxu0 0
      %1136 = vmatpush1.bf16.msra.mxu0 0
      %1137 = vmatprep.subr.bf16.mxu0 0
      %1138 = vmatpush1.bf16.msra.mxu0 0
      %1139 = vmatprep.subr.bf16.mxu0 0
      %1140 = vmatpush1.bf16.msra.mxu0 0
      %1141 = vmatprep.subr.bf16.mxu0 0
      %1142 = vmatpush1.bf16.msra.mxu0 0
      %1143 = vmatprep.subr.bf16.mxu0 0
      %1144 = vmatpush1.bf16.msra.mxu0 0
      %1145 = vmatprep.subr.bf16.mxu0 0
      %1146 = vmatpush1.bf16.msra.mxu0 0
      %1147 = vmatprep.subr.bf16.mxu0 0
      %1148 = vmatpush1.bf16.msra.mxu0 0
      %1149 = vmatprep.subr.bf16.mxu0 0
      %1150 = vmatpush1.bf16.msra.mxu0 0
      %1151 = vmatprep.subr.bf16.mxu0 0
      %1152 = vmatpush1.bf16.msra.mxu0 0
      %1153 = vmatprep.subr.bf16.mxu0 0
      %1154 = vmatpush1.bf16.msra.mxu0 0
      %1155 = vmatprep.subr.bf16.mxu0 0
      %1156 = vmatpush1.bf16.msra.mxu0 0
      %1157 = vmatprep.subr.bf16.mxu0 0
      %1158 = vmatpush1.bf16.msra.mxu0 0
      %1159 = vmatprep.subr.bf16.mxu0 0
      %1160 = vmatpush1.bf16.msra.mxu0 0
      %1161 = vmatprep.mubr.bf16.mxu0 0
      %1162 = vmatmul.mubr.bf16.gmra.mrb[0].mxu0 %v1118
      %v1163 = vpop.f32.mrb[0].mxu0
      %v1164 = vadd.f32 0.0, %v1163
      %v1165 = vpop.f32.mrb[0].mxu0
      %v1166 = vadd.f32 0.0, %v1165
      %v1167 = vpop.f32.mrb[0].mxu0
      %v1168 = vpop.f32.mrb[0].mxu0
      %1169 = vdwg.mxu0
      %1170 = vmatprep.subr.bf16.mxu0 0
      %1171 = vmatpush1.bf16.msra.mxu0 %v1127
      %1172 = vmatprep.subr.bf16.mxu0 0
      %1173 = vmatpush1.bf16.msra.mxu0 0
      %1174 = vmatprep.subr.bf16.mxu0 0
      %1175 = vmatpush1.bf16.msra.mxu0 0
      %1176 = vmatprep.subr.bf16.mxu0 0
      %1177 = vmatpush1.bf16.msra.mxu0 0
      %1178 = vmatprep.subr.bf16.mxu0 0
      %1179 = vmatpush1.bf16.msra.mxu0 0
      %1180 = vmatprep.subr.bf16.mxu0 0
      %1181 = vmatpush1.bf16.msra.mxu0 0
      %1182 = vmatprep.subr.bf16.mxu0 0
      %1183 = vmatpush1.bf16.msra.mxu0 0
      %1184 = vmatprep.subr.bf16.mxu0 0
      %1185 = vmatpush1.bf16.msra.mxu0 0
      %1186 = vmatprep.subr.bf16.mxu0 0
      %1187 = vmatpush1.bf16.msra.mxu0 0
      %1188 = vmatprep.subr.bf16.mxu0 0
      %1189 = vmatpush1.bf16.msra.mxu0 0
      %1190 = vmatprep.subr.bf16.mxu0 0
      %1191 = vmatpush1.bf16.msra.mxu0 0
      %1192 = vmatprep.subr.bf16.mxu0 0
      %1193 = vmatpush1.bf16.msra.mxu0 0
      %1194 = vmatprep.subr.bf16.mxu0 0
      %1195 = vmatpush1.bf16.msra.mxu0 0
      %1196 = vmatprep.subr.bf16.mxu0 0
      %1197 = vmatpush1.bf16.msra.mxu0 0
      %1198 = vmatprep.subr.bf16.mxu0 0
      %1199 = vmatpush1.bf16.msra.mxu0 0
      %1200 = vmatprep.subr.bf16.mxu0 0
      %1201 = vmatpush1.bf16.msra.mxu0 0
      %1202 = vmatprep.mubr.bf16.mxu0 0
      %1203 = vmatmul.mubr.bf16.gmra.mrb[0].mxu0 %v1118
      %v1204 = vpop.f32.mrb[0].mxu0
      %v1205 = vadd.f32 0.0, %v1204
      %v1206 = vpop.f32.mrb[0].mxu0
      %v1207 = vpop.f32.mrb[0].mxu0
      %v1208 = vpop.f32.mrb[0].mxu0
      %1209 = vdwg.mxu0
      %v1210 = vadd.f32 %v1081, %v1164
      %v1211 = vadd.f32 %v1082, %v1166
      %v1212 = vadd.f32 %v1083, %v1205
      %v1213 = vld [vmem:[%s192] sm:$0xff]
      %s1214 = scalar_lea.vmem %s1, 32
      %v1215 = vld [vmem:[%s1214] sm:$0xf]
      %v1217 = vcombine.high %v1213, %v1213
      %v1219 = vunpack.c.l.s4 1983009808
      %v1220 = vunpack.c.0.s8 %v1219
      %v1221 = vlaneseq
      %v1222 = vshrl.u32 %v1221, 7
      %v1223 = vsub.s32 %v1220, %v1222
      %v1224 = vrot.slane %v1213, %v1223
      %v1226 = vunpack.c.l.s4 1983009808
      %v1227 = vunpack.c.0.s8 %v1226
      %v1228 = vlaneseq
      %v1229 = vshrl.u32 %v1228, 7
      %v1230 = vsub.s32 %v1227, %v1229
      %v1231 = vrot.slane %v1217, %v1230
      %v1232 = vcombine.high %v1224, %v1224
      %v1233 = vcombine.high %v1231, %v1231
      %1234 = vrot.lane.b32.xlu0 %v1224, 90
      %v1235 = vpop.permute.xlu0 %1234
      %1236 = vrot.lane.b32.xlu0 %v1232, 90
      %v1237 = vpop.permute.xlu0 %1236
      %1238 = vrot.lane.b32.xlu0 %v1231, 90
      %v1239 = vpop.permute.xlu0 %1238
      %1240 = vrot.lane.b32.xlu0 %v1233, 90
      %v1241 = vpop.permute.xlu0 %1240
      %vm1242 = vcmask 736256
      %v1243 = vsel %vm1242, %v1235, %v1237
      %v1244 = vsel %vm1242, %v1237, %v1239
      %v1245 = vsel %vm1242, %v1239, %v1241
      %v1247 = vsel %vm234, %v1215, 0
      %v1250 = vsel %vm238, %v1243, 0
      %v1253 = vsel %vm238, %v1244, 0
      %v1256 = vsel %vm238, %v1245, 0
      %1258 = vmatprep.subr.bf16.mxu0 %v1253
      %1259 = vmatpush1.bf16.msra.mxu0 %v1250
      %1260 = vmatprep.subr.bf16.mxu0 0
      %1261 = vmatpush1.bf16.msra.mxu0 0
      %1262 = vmatprep.subr.bf16.mxu0 0
      %1263 = vmatpush1.bf16.msra.mxu0 0
      %1264 = vmatprep.subr.bf16.mxu0 0
      %1265 = vmatpush1.bf16.msra.mxu0 0
      %1266 = vmatprep.subr.bf16.mxu0 0
      %1267 = vmatpush1.bf16.msra.mxu0 0
      %1268 = vmatprep.subr.bf16.mxu0 0
      %1269 = vmatpush1.bf16.msra.mxu0 0
      %1270 = vmatprep.subr.bf16.mxu0 0
      %1271 = vmatpush1.bf16.msra.mxu0 0
      %1272 = vmatprep.subr.bf16.mxu0 0
      %1273 = vmatpush1.bf16.msra.mxu0 0
      %1274 = vmatprep.subr.bf16.mxu0 0
      %1275 = vmatpush1.bf16.msra.mxu0 0
      %1276 = vmatprep.subr.bf16.mxu0 0
      %1277 = vmatpush1.bf16.msra.mxu0 0
      %1278 = vmatprep.subr.bf16.mxu0 0
      %1279 = vmatpush1.bf16.msra.mxu0 0
      %1280 = vmatprep.subr.bf16.mxu0 0
      %1281 = vmatpush1.bf16.msra.mxu0 0
      %1282 = vmatprep.subr.bf16.mxu0 0
      %1283 = vmatpush1.bf16.msra.mxu0 0
      %1284 = vmatprep.subr.bf16.mxu0 0
      %1285 = vmatpush1.bf16.msra.mxu0 0
      %1286 = vmatprep.subr.bf16.mxu0 0
      %1287 = vmatpush1.bf16.msra.mxu0 0
      %1288 = vmatprep.subr.bf16.mxu0 0
      %1289 = vmatpush1.bf16.msra.mxu0 0
      %1290 = vmatprep.mubr.bf16.mxu0 0
      %1291 = vmatmul.mubr.bf16.gmra.mrb[0].mxu0 %v1247
      %v1292 = vpop.f32.mrb[0].mxu0
      %v1293 = vadd.f32 0.0, %v1292
      %v1294 = vpop.f32.mrb[0].mxu0
      %v1295 = vadd.f32 0.0, %v1294
      %v1296 = vpop.f32.mrb[0].mxu0
      %v1297 = vpop.f32.mrb[0].mxu0
      %1298 = vdwg.mxu0
      %1299 = vmatprep.subr.bf16.mxu0 0
      %1300 = vmatpush1.bf16.msra.mxu0 %v1256
      %1301 = vmatprep.subr.bf16.mxu0 0
      %1302 = vmatpush1.bf16.msra.mxu0 0
      %1303 = vmatprep.subr.bf16.mxu0 0
      %1304 = vmatpush1.bf16.msra.mxu0 0
      %1305 = vmatprep.subr.bf16.mxu0 0
      %1306 = vmatpush1.bf16.msra.mxu0 0
      %1307 = vmatprep.subr.bf16.mxu0 0
      %1308 = vmatpush1.bf16.msra.mxu0 0
      %1309 = vmatprep.subr.bf16.mxu0 0
      %1310 = vmatpush1.bf16.msra.mxu0 0
      %1311 = vmatprep.subr.bf16.mxu0 0
      %1312 = vmatpush1.bf16.msra.mxu0 0
      %1313 = vmatprep.subr.bf16.mxu0 0
      %1314 = vmatpush1.bf16.msra.mxu0 0
      %1315 = vmatprep.subr.bf16.mxu0 0
      %1316 = vmatpush1.bf16.msra.mxu0 0
      %1317 = vmatprep.subr.bf16.mxu0 0
      %1318 = vmatpush1.bf16.msra.mxu0 0
      %1319 = vmatprep.subr.bf16.mxu0 0
      %1320 = vmatpush1.bf16.msra.mxu0 0
      %1321 = vmatprep.subr.bf16.mxu0 0
      %1322 = vmatpush1.bf16.msra.mxu0 0
      %1323 = vmatprep.subr.bf16.mxu0 0
      %1324 = vmatpush1.bf16.msra.mxu0 0
      %1325 = vmatprep.subr.bf16.mxu0 0
      %1326 = vmatpush1.bf16.msra.mxu0 0
      %1327 = vmatprep.subr.bf16.mxu0 0
      %1328 = vmatpush1.bf16.msra.mxu0 0
      %1329 = vmatprep.subr.bf16.mxu0 0
      %1330 = vmatpush1.bf16.msra.mxu0 0
      %1331 = vmatprep.mubr.bf16.mxu0 0
      %1332 = vmatmul.mubr.bf16.gmra.mrb[0].mxu0 %v1247
      %v1333 = vpop.f32.mrb[0].mxu0
      %v1334 = vadd.f32 0.0, %v1333
      %v1335 = vpop.f32.mrb[0].mxu0
      %v1336 = vpop.f32.mrb[0].mxu0
      %v1337 = vpop.f32.mrb[0].mxu0
      %1338 = vdwg.mxu0
      %v1339 = vadd.f32 %v1210, %v1293
      %v1340 = vadd.f32 %v1211, %v1295
      %v1341 = vadd.f32 %v1212, %v1334
      %v1342 = vld [vmem:[%s2] sm:$0xff]
      %v1343 = vld [vmem:[%s3] sm:$0x7]
      %1345 = vset.pattern.permute.xlu0 0
      %1346 = vperm.xlu0 %1345, %v1342
      %v1347 = vpop.permute.xlu0 %1346
      %v1349 = vadd.f32 %v1339, %v1347
      %v1350 = vadd.f32 %v1340, %v1347
      %v1351 = vadd.f32 %v1341, %v1347
      %v1353 = vlaneseq
      %v1354 = vshrl.u32 %v1353, 7
      %v1355 = vsub.s32 0, %v1354
      %v1356 = vrot.slane %v1343, %v1355
      %v1357 = vlaneseq
      %v1358 = vshrl.u32 %v1357, 7
      %v1359 = vsub.s32 1, %v1358
      %v1360 = vrot.slane %v1343, %v1359
      %v1361 = vlaneseq
      %v1362 = vshrl.u32 %v1361, 7
      %v1363 = vsub.s32 2, %v1362
      %v1364 = vrot.slane %v1343, %v1363
      %v1368 = vmul.f32 %v1349, %v1356
      %v1369 = vmul.f32 %v1350, %v1360
      %v1370 = vmul.f32 %v1351, %v1364
      %v1371 = vadd.f32 %v1368, %v1369
      %v1372 = vadd.f32 %v1371, %v1370
      %1373 = vadd.xlane.f32.xlu0 %v1372
      %v1374 = vpop.xlane.xlu0 %1373
      %v1375 = vmul.f32 %v1374, 0.00390625
      %v1376 = vsub.f32 %v1349, %v1375
      %v1377 = vsub.f32 %v1350, %v1375
      %v1378 = vsub.f32 %v1351, %v1375
      %v1379 = vmul.f32 %v1376, %v1376
      %v1380 = vmul.f32 %v1377, %v1377
      %v1381 = vmul.f32 %v1378, %v1378
      %v1382 = vmul.f32 %v1379, %v1356
      %v1383 = vmul.f32 %v1380, %v1360
      %v1384 = vmul.f32 %v1381, %v1364
      %v1385 = vadd.f32 %v1382, %v1383
      %v1386 = vadd.f32 %v1385, %v1384
      %1387 = vadd.xlane.f32.xlu0 %v1386
      %v1388 = vpop.xlane.xlu0 %1387
      %v1389 = vmul.f32 %v1388, 0.00390625
      %v1390 = vadd.f32 %v1389, 1e-05
      %v1391 = vrsqrt.pop %v1390
      %v1392 = vmul.f32 %v1376, %v1391
      %v1393 = vmul.f32 %v1377, %v1391
      %v1394 = vmul.f32 %v1378, %v1391
      %1395 = vset.pattern.permute.xlu0 1
      %1396 = vperm.xlu0 %1395, %v1342
      %v1397 = vpop.permute.xlu0 %1396
      %v1399 = vmul.f32 %v1392, %v1397
      %v1400 = vmul.f32 %v1393, %v1397
      %v1401 = vmul.f32 %v1394, %v1397
      %1402 = vset.pattern.permute.xlu0 2
      %1403 = vperm.xlu0 %1402, %v1342
      %v1404 = vpop.permute.xlu0 %1403
      %v1406 = vadd.f32 %v1399, %v1404
      %v1407 = vadd.f32 %v1400, %v1404
      %v1408 = vadd.f32 %v1401, %v1404
      %vm1409 = vcmp.ge.f32.partialorder %v1406, 0.0
      %vm1410 = vcmp.ge.f32.partialorder %v1407, 0.0
      %vm1411 = vcmp.ge.f32.partialorder %v1408, 0.0
      %v1412 = vmul.f32 %v1406, 0.2
      %v1413 = vmul.f32 %v1407, 0.2
      %v1414 = vmul.f32 %v1408, 0.2
      %v1415 = vsel %vm1409, %v1406, %v1412
      %v1416 = vsel %vm1410, %v1407, %v1413
      %v1417 = vsel %vm1411, %v1408, %v1414
      %1418 = vst [vmem:[%s197] sm:$0xff] %v1415
      %1419 = vst [vmem:[%s197 + $0x8] sm:$0xff] %v1416
      %1420 = vst [vmem:[%s197 + $0x10] sm:$0xff] %v1417
      %p1421 = scmp.lt.s32.totalorder %s15, 1
      %s1422 = scalar_select %p1421, %s15, 1
      %s1423 = smul.addr %s1422, 3
      %s1424 = smul.addr %s1423, 8
      %s1425 = scalar_lea.vmem %s4, %s1424
      // Predicated region
      $region37: #{conv_layer_forward.1} parent=35 // pred_check
        %p1426 = pneg %p122
      $region38: #{conv_layer_forward.1} parent=35 // pred_check_branch
        %1428 = sbr.rel (%p1426) target = $region40
      $region39: #{conv_layer_forward.1} parent=35 // pred_region
        _
      $region40: #{conv_layer_forward.1} parent=35 // pred_fallthru
        _
    $region36: #{conv_layer_forward.1} parent=5 // pred_fallthru
      _
    %p1429 = scmp.le.s32.totalorder 2, %s10
    // Predicated region
    $region41: #{conv_layer_forward.1} parent=5 // pred_check
      %p1430 = pneg %p1429
    $region42: #{conv_layer_forward.1} parent=5 // pred_check_branch
      %1432 = sbr.rel (%p1430) target = $region44
    $region43: #{conv_layer_forward.1} parent=5 // pred_region
      %s1433 = ssub.s32 %s10, 2
      // Predicated region
      $region45: #{conv_layer_forward.1} parent=43 // pred_check
        %p1434 = pneg %p128
      $region46: #{conv_layer_forward.1} parent=43 // pred_check_branch
        %1436 = sbr.rel (%p1434) target = $region48
      $region47: #{conv_layer_forward.1} parent=43 // pred_region
        %p1437 = scmp.lt.s32.totalorder %s16, 1
        %s1438 = scalar_select %p1437, %s16, 1
        %s1439 = smul.addr %s1438, 3
        %s1440 = smul.addr %s1439, 8
        %s1441 = scalar_lea.vmem %s4, %s1440
      $region48: #{conv_layer_forward.1} parent=43 // pred_fallthru
        _
    $region44: #{conv_layer_forward.1} parent=5 // pred_fallthru
      _
  $region6: #{conv_layer_forward.1} parent=0 // loop_footer
    %s14 = sadd.s32 1, %s10
  $region7: #{conv_layer_forward.1} parent=0 // loop_footer_branch
    %9 = sbr.rel target = $region3
  $region8: #{conv_layer_forward.1} parent=0 // loop_exit
    _

</llo_original>
